<compile_context>
chip_gen: v7x
topology: tpu7x:2x2x1
jax: 0.10.0
libtpu: 0.0.40
codegen_flags: <defaults>
</compile_context>

<pallas_src>
import functools

import jax
import jax.numpy as jnp
from jax.experimental import pallas as pl
from jax.experimental.pallas import tpu as pltpu

LANE = 128
NEG_SLOPE = 0.01  # PyTorch F.leaky_relu default


def _round_up(x, m):
    return ((x + m - 1) // m) * m


def _leaky_relu(x):
    return jnp.where(x > 0, x, NEG_SLOPE * x)


# ---------------------------------------------------------------------------
# Single fused Pallas kernel for the whole forward pass
# ---------------------------------------------------------------------------
def _fused_forward_kernel(u_ref, v_ref, uv_adj_ref, vu_adj_ref, w_ref, b_ref,
                          o_ref, *, plan, num_rounds, msg_pass_dirs,
                          final_layer_act):
    """Whole BipartiteGCN forward; everything resident in VMEM."""

    def mlp(x, layer_ids):
        n = len(layer_ids)
        for j, li in enumerate(layer_ids):          # static unroll
            y = jnp.dot(x, w_ref[li], preferred_element_type=jnp.float32)
            y = y + b_ref[li]                       # (1, P) broadcast over rows
            if (j < n - 1) or final_layer_act:
                y = _leaky_relu(y)
            x = y
        return x

    u = u_ref[...]
    v = v_ref[...]
    # bf16 in HBM (lossless for 0/1), widen once on-chip for the f32 MXU path.
    uv_adj = uv_adj_ref[...].astype(jnp.float32)
    vu_adj = vu_adj_ref[...].astype(jnp.float32)

    for _ in range(num_rounds):                     # static unroll
        for i, d in enumerate(msg_pass_dirs):       # static unroll
            if d == "uu":
                u = mlp(u, plan[i])
            elif d == "vv":
                v = mlp(v, plan[i])
            elif d == "uv":
                msgs = mlp(u, plan[i])
                v = jnp.dot(uv_adj, msgs, preferred_element_type=jnp.float32)
            elif d == "vu":
                msgs = mlp(v, plan[i])
                u = jnp.dot(vu_adj, msgs, preferred_element_type=jnp.float32)

    out = mlp(v, plan[-1])                          # final readout MLP
    o_ref[...] = out.astype(o_ref.dtype)


# ---------------------------------------------------------------------------
# Parameter construction / packing (host side)
# ---------------------------------------------------------------------------
def init_mlp(key, in_feats, n_hids, out_feats):
    dims = [in_feats] + list(n_hids) + [out_feats]
    params = []
    for i in range(len(dims) - 1):
        key, k_w, k_b = jax.random.split(key, 3)
        w = jax.random.normal(k_w, (dims[i], dims[i + 1]), jnp.float32) * (
            1.0 / jnp.sqrt(jnp.float32(dims[i]))
        )
        b = jax.random.normal(k_b, (1, dims[i + 1]), jnp.float32) * 0.01
        params.append((w, b))
    return key, params


def init_bipartite_gcn(key, u_feats, v_feats, msg_pass_dirs, n_hids):
    mlps = []
    for d in msg_pass_dirs:
        if d == "uu":
            key, p = init_mlp(key, u_feats, n_hids, u_feats)
        elif d == "vv":
            key, p = init_mlp(key, v_feats, n_hids, v_feats)
        elif d == "uv":
            key, p = init_mlp(key, u_feats, n_hids, v_feats)
        elif d == "vu":
            key, p = init_mlp(key, v_feats, n_hids, u_feats)
        else:
            raise ValueError(d)
        mlps.append(p)
    # final readout: v_feats -> [n_hids[0]] -> 1
    key, p = init_mlp(key, v_feats, [n_hids[0]], 1)
    mlps.append(p)
    return mlps


def pack_mlps(mlps):
    """Zero-pad every (w, b) to a common lane-dense width and stack them."""
    dims = set()
    for layers in mlps:
        for (w, _) in layers:
            dims.add(w.shape[0])
            dims.add(w.shape[1])
    P = _round_up(max(dims), LANE)

    ws, bs, plan = [], [], []
    idx = 0
    for layers in mlps:
        ids = []
        for (w, b) in layers:
            wp = jnp.zeros((P, P), jnp.float32).at[: w.shape[0], : w.shape[1]].set(w)
            bp = jnp.zeros((1, P), jnp.float32).at[:, : b.shape[1]].set(b)
            ws.append(wp)
            bs.append(bp)
            ids.append(idx)
            idx += 1
        plan.append(tuple(ids))
    return jnp.stack(ws), jnp.stack(bs), tuple(plan)


# ---------------------------------------------------------------------------
# Forward wrapper
# ---------------------------------------------------------------------------
def bipartite_gcn_forward(w_stack, b_stack, plan, msg_pass_dirs, num_rounds,
                          u, v, uv_adj, vu_adj, out_feats=1,
                          final_layer_act=True):
    num_u, u_f = u.shape
    num_v, v_f = v.shape
    P = w_stack.shape[-1]
    L = w_stack.shape[0]

    # Lane-pad node features to P (multiple of 128) -> lane-dense matmuls/stores.
    u_p = jnp.pad(u.astype(jnp.float32), ((0, 0), (0, P - u_f)))
    v_p = jnp.pad(v.astype(jnp.float32), ((0, 0), (0, P - v_f)))
    # 0/1 adjacency: bf16 is exact and halves HBM traffic.
    uv_bf = uv_adj.astype(jnp.bfloat16)
    vu_bf = vu_adj.astype(jnp.bfloat16)

    kernel = functools.partial(
        _fused_forward_kernel,
        plan=plan,
        num_rounds=num_rounds,
        msg_pass_dirs=tuple(msg_pass_dirs),
        final_layer_act=final_layer_act,
    )

    out_padded = pl.pallas_call(
        kernel,
        grid=(1,),
        out_shape=jax.ShapeDtypeStruct((num_v, P), jnp.float32),
        in_specs=[
            pl.BlockSpec((num_u, P), lambda i: (0, 0)),
            pl.BlockSpec((num_v, P), lambda i: (0, 0)),
            pl.BlockSpec((num_v, num_u), lambda i: (0, 0)),
            pl.BlockSpec((num_u, num_v), lambda i: (0, 0)),
            pl.BlockSpec((L, P, P), lambda i: (0, 0, 0)),
            pl.BlockSpec((L, 1, P), lambda i: (0, 0, 0)),
        ],
        out_specs=pl.BlockSpec((num_v, P), lambda i: (0, 0)),
        compiler_params=pltpu.CompilerParams(
            dimension_semantics=("arbitrary",),
        ),
    )(u_p, v_p, uv_bf, vu_bf, w_stack, b_stack)

    return out_padded[:, :out_feats]


# ---------------------------------------------------------------------------
# Example run
# ---------------------------------------------------------------------------
if __name__ == "__main__":
    key = jax.random.PRNGKey(0)

    # Small synthetic bipartite graph.
    num_u, num_v = 32, 16
    u_feats, v_feats = 8, 8
    n_hids = [32]
    num_rounds = 2
    msg_pass_dirs = ["uu", "uv", "vv", "vu"]

    k1, k2, k3, k4, k_params = jax.random.split(key, 5)
    u_node_feats = jax.random.normal(k1, (num_u, u_feats), jnp.float32)
    v_node_feats = jax.random.normal(k2, (num_v, v_feats), jnp.float32)
    # uv_adj: (num_v, num_u) so that v <- uv_adj @ f(u); vu_adj: (num_u, num_v).
    uv_adj_mat = (jax.random.uniform(k3, (num_v, num_u)) < 0.3).astype(jnp.float32)
    vu_adj_mat = (jax.random.uniform(k4, (num_u, num_v)) < 0.3).astype(jnp.float32)

    mlps = init_bipartite_gcn(k_params, u_feats, v_feats, msg_pass_dirs, n_hids)
    w_stack, b_stack, plan = pack_mlps(mlps)

    @jax.jit
    def run(u, v, uv, vu, ws, bs):
        return bipartite_gcn_forward(
            ws, bs, plan, tuple(msg_pass_dirs), num_rounds, u, v, uv, vu,
            out_feats=1, final_layer_act=True,
        )

    out = run(u_node_feats, v_node_feats, uv_adj_mat, vu_adj_mat,
              w_stack, b_stack)
    jax.block_until_ready(out)
    assert out.shape == (num_v, 1), out.shape
    print("KERNEL_OK")
</pallas_src>

<mosaic_0001>
module attributes {stable_mosaic.version = 11 : i64} {
  func.func @_fused_forward_kernel(%arg0: i32, %arg1: memref<32x128xf32, #tpu.memory_space<vmem>>, %arg2: memref<16x128xf32, #tpu.memory_space<vmem>>, %arg3: memref<16x32xbf16, #tpu.memory_space<vmem>>, %arg4: memref<32x16xbf16, #tpu.memory_space<vmem>>, %arg5: memref<10x128x128xf32, #tpu.memory_space<vmem>>, %arg6: memref<10x1x128xf32, #tpu.memory_space<vmem>>, %arg7: memref<16x128xf32, #tpu.memory_space<vmem>>) attributes {dimension_semantics = [#tpu.dimension_semantics<arbitrary>], iteration_bounds = array<i64: 1>, scalar_prefetch = 0 : i64, scratch_operands = 0 : i64, tpu.core_type = #tpu.core_type<tc>, window_params = [{pipeline_mode = #tpu.pipeline_mode<synchronous>, transform_indices = @transform_0, window_bounds = array<i64: 32, 128>}, {pipeline_mode = #tpu.pipeline_mode<synchronous>, transform_indices = @transform_1, window_bounds = array<i64: 16, 128>}, {pipeline_mode = #tpu.pipeline_mode<synchronous>, transform_indices = @transform_2, window_bounds = array<i64: 16, 32>}, {pipeline_mode = #tpu.pipeline_mode<synchronous>, transform_indices = @transform_3, window_bounds = array<i64: 32, 16>}, {pipeline_mode = #tpu.pipeline_mode<synchronous>, transform_indices = @transform_4, window_bounds = array<i64: 10, 128, 128>}, {pipeline_mode = #tpu.pipeline_mode<synchronous>, transform_indices = @transform_5, window_bounds = array<i64: 10, 1, 128>}, {pipeline_mode = #tpu.pipeline_mode<synchronous>, transform_indices = @transform_6, window_bounds = array<i64: 16, 128>}]} {
    %c0 = arith.constant 0 : index
    %c0_0 = arith.constant 0 : index
    %0 = vector.load %arg1[%c0, %c0_0] : memref<32x128xf32, #tpu.memory_space<vmem>>, vector<32x128xf32>
    %c0_1 = arith.constant 0 : index
    %c0_2 = arith.constant 0 : index
    %1 = vector.load %arg3[%c0_1, %c0_2] : memref<16x32xbf16, #tpu.memory_space<vmem>>, vector<16x32xbf16>
    %2 = arith.extf %1 : vector<16x32xbf16> to vector<16x32xf32>
    %c0_3 = arith.constant 0 : index
    %c0_4 = arith.constant 0 : index
    %3 = vector.load %arg4[%c0_3, %c0_4] : memref<32x16xbf16, #tpu.memory_space<vmem>>, vector<32x16xbf16>
    %4 = arith.extf %3 : vector<32x16xbf16> to vector<32x16xf32>
    %c0_5 = arith.constant 0 : index
    %c0_6 = arith.constant 0 : index
    %c0_7 = arith.constant 0 : index
    %5 = vector.load %arg5[%c0_5, %c0_6, %c0_7] : memref<10x128x128xf32, #tpu.memory_space<vmem>>, vector<1x128x128xf32>
    %6 = vector.shape_cast %5 : vector<1x128x128xf32> to vector<128x128xf32>
    %cst = arith.constant dense<0.000000e+00> : vector<32x128xf32>
    %7 = tpu.matmul %0, %6, %cst {dimension_numbers = #tpu.dot_dimension_numbers<[1], [0], [0], [1], [0, 0, 1, 1], [], []>} : vector<32x128xf32>, vector<128x128xf32>, vector<32x128xf32> -> vector<32x128xf32>
    %c0_8 = arith.constant 0 : index
    %c0_9 = arith.constant 0 : index
    %c0_10 = arith.constant 0 : index
    %8 = vector.load %arg6[%c0_8, %c0_9, %c0_10] : memref<10x1x128xf32, #tpu.memory_space<vmem>>, vector<1x1x128xf32>
    %9 = vector.shape_cast %8 : vector<1x1x128xf32> to vector<1x128xf32>
    %10 = vector.broadcast %9 : vector<1x128xf32> to vector<32x128xf32>
    %11 = arith.addf %7, %10 : vector<32x128xf32>
    %cst_11 = arith.constant 0.000000e+00 : f32
    %12 = vector.broadcast %cst_11 : f32 to vector<32x128xf32>
    %13 = arith.cmpf ogt, %11, %12 : vector<32x128xf32>
    %cst_12 = arith.constant 0.00999999977 : f32
    %14 = vector.broadcast %cst_12 : f32 to vector<32x128xf32>
    %15 = arith.mulf %14, %11 : vector<32x128xf32>
    %16 = arith.select %13, %11, %15 : vector<32x128xi1>, vector<32x128xf32>
    %c1 = arith.constant 1 : index
    %c0_13 = arith.constant 0 : index
    %c0_14 = arith.constant 0 : index
    %17 = vector.load %arg5[%c1, %c0_13, %c0_14] : memref<10x128x128xf32, #tpu.memory_space<vmem>>, vector<1x128x128xf32>
    %18 = vector.shape_cast %17 : vector<1x128x128xf32> to vector<128x128xf32>
    %cst_15 = arith.constant dense<0.000000e+00> : vector<32x128xf32>
    %19 = tpu.matmul %16, %18, %cst_15 {dimension_numbers = #tpu.dot_dimension_numbers<[1], [0], [0], [1], [0, 0, 1, 1], [], []>} : vector<32x128xf32>, vector<128x128xf32>, vector<32x128xf32> -> vector<32x128xf32>
    %c1_16 = arith.constant 1 : index
    %c0_17 = arith.constant 0 : index
    %c0_18 = arith.constant 0 : index
    %20 = vector.load %arg6[%c1_16, %c0_17, %c0_18] : memref<10x1x128xf32, #tpu.memory_space<vmem>>, vector<1x1x128xf32>
    %21 = vector.shape_cast %20 : vector<1x1x128xf32> to vector<1x128xf32>
    %22 = vector.broadcast %21 : vector<1x128xf32> to vector<32x128xf32>
    %23 = arith.addf %19, %22 : vector<32x128xf32>
    %cst_19 = arith.constant 0.000000e+00 : f32
    %24 = vector.broadcast %cst_19 : f32 to vector<32x128xf32>
    %25 = arith.cmpf ogt, %23, %24 : vector<32x128xf32>
    %cst_20 = arith.constant 0.00999999977 : f32
    %26 = vector.broadcast %cst_20 : f32 to vector<32x128xf32>
    %27 = arith.mulf %26, %23 : vector<32x128xf32>
    %28 = arith.select %25, %23, %27 : vector<32x128xi1>, vector<32x128xf32>
    %c2 = arith.constant 2 : index
    %c0_21 = arith.constant 0 : index
    %c0_22 = arith.constant 0 : index
    %29 = vector.load %arg5[%c2, %c0_21, %c0_22] : memref<10x128x128xf32, #tpu.memory_space<vmem>>, vector<1x128x128xf32>
    %30 = vector.shape_cast %29 : vector<1x128x128xf32> to vector<128x128xf32>
    %cst_23 = arith.constant dense<0.000000e+00> : vector<32x128xf32>
    %31 = tpu.matmul %28, %30, %cst_23 {dimension_numbers = #tpu.dot_dimension_numbers<[1], [0], [0], [1], [0, 0, 1, 1], [], []>} : vector<32x128xf32>, vector<128x128xf32>, vector<32x128xf32> -> vector<32x128xf32>
    %c2_24 = arith.constant 2 : index
    %c0_25 = arith.constant 0 : index
    %c0_26 = arith.constant 0 : index
    %32 = vector.load %arg6[%c2_24, %c0_25, %c0_26] : memref<10x1x128xf32, #tpu.memory_space<vmem>>, vector<1x1x128xf32>
    %33 = vector.shape_cast %32 : vector<1x1x128xf32> to vector<1x128xf32>
    %34 = vector.broadcast %33 : vector<1x128xf32> to vector<32x128xf32>
    %35 = arith.addf %31, %34 : vector<32x128xf32>
    %cst_27 = arith.constant 0.000000e+00 : f32
    %36 = vector.broadcast %cst_27 : f32 to vector<32x128xf32>
    %37 = arith.cmpf ogt, %35, %36 : vector<32x128xf32>
    %cst_28 = arith.constant 0.00999999977 : f32
    %38 = vector.broadcast %cst_28 : f32 to vector<32x128xf32>
    %39 = arith.mulf %38, %35 : vector<32x128xf32>
    %40 = arith.select %37, %35, %39 : vector<32x128xi1>, vector<32x128xf32>
    %c3 = arith.constant 3 : index
    %c0_29 = arith.constant 0 : index
    %c0_30 = arith.constant 0 : index
    %41 = vector.load %arg5[%c3, %c0_29, %c0_30] : memref<10x128x128xf32, #tpu.memory_space<vmem>>, vector<1x128x128xf32>
    %42 = vector.shape_cast %41 : vector<1x128x128xf32> to vector<128x128xf32>
    %cst_31 = arith.constant dense<0.000000e+00> : vector<32x128xf32>
    %43 = tpu.matmul %40, %42, %cst_31 {dimension_numbers = #tpu.dot_dimension_numbers<[1], [0], [0], [1], [0, 0, 1, 1], [], []>} : vector<32x128xf32>, vector<128x128xf32>, vector<32x128xf32> -> vector<32x128xf32>
    %c3_32 = arith.constant 3 : index
    %c0_33 = arith.constant 0 : index
    %c0_34 = arith.constant 0 : index
    %44 = vector.load %arg6[%c3_32, %c0_33, %c0_34] : memref<10x1x128xf32, #tpu.memory_space<vmem>>, vector<1x1x128xf32>
    %45 = vector.shape_cast %44 : vector<1x1x128xf32> to vector<1x128xf32>
    %46 = vector.broadcast %45 : vector<1x128xf32> to vector<32x128xf32>
    %47 = arith.addf %43, %46 : vector<32x128xf32>
    %cst_35 = arith.constant 0.000000e+00 : f32
    %48 = vector.broadcast %cst_35 : f32 to vector<32x128xf32>
    %49 = arith.cmpf ogt, %47, %48 : vector<32x128xf32>
    %cst_36 = arith.constant 0.00999999977 : f32
    %50 = vector.broadcast %cst_36 : f32 to vector<32x128xf32>
    %51 = arith.mulf %50, %47 : vector<32x128xf32>
    %52 = arith.select %49, %47, %51 : vector<32x128xi1>, vector<32x128xf32>
    %cst_37 = arith.constant dense<0.000000e+00> : vector<16x128xf32>
    %53 = tpu.matmul %2, %52, %cst_37 {dimension_numbers = #tpu.dot_dimension_numbers<[1], [0], [0], [1], [0, 0, 1, 1], [], []>} : vector<16x32xf32>, vector<32x128xf32>, vector<16x128xf32> -> vector<16x128xf32>
    %c4 = arith.constant 4 : index
    %c0_38 = arith.constant 0 : index
    %c0_39 = arith.constant 0 : index
    %54 = vector.load %arg5[%c4, %c0_38, %c0_39] : memref<10x128x128xf32, #tpu.memory_space<vmem>>, vector<1x128x128xf32>
    %55 = vector.shape_cast %54 : vector<1x128x128xf32> to vector<128x128xf32>
    %cst_40 = arith.constant dense<0.000000e+00> : vector<16x128xf32>
    %56 = tpu.matmul %53, %55, %cst_40 {dimension_numbers = #tpu.dot_dimension_numbers<[1], [0], [0], [1], [0, 0, 1, 1], [], []>} : vector<16x128xf32>, vector<128x128xf32>, vector<16x128xf32> -> vector<16x128xf32>
    %c4_41 = arith.constant 4 : index
    %c0_42 = arith.constant 0 : index
    %c0_43 = arith.constant 0 : index
    %57 = vector.load %arg6[%c4_41, %c0_42, %c0_43] : memref<10x1x128xf32, #tpu.memory_space<vmem>>, vector<1x1x128xf32>
    %58 = vector.shape_cast %57 : vector<1x1x128xf32> to vector<1x128xf32>
    %59 = vector.broadcast %58 : vector<1x128xf32> to vector<16x128xf32>
    %60 = arith.addf %56, %59 : vector<16x128xf32>
    %cst_44 = arith.constant 0.000000e+00 : f32
    %61 = vector.broadcast %cst_44 : f32 to vector<16x128xf32>
    %62 = arith.cmpf ogt, %60, %61 : vector<16x128xf32>
    %cst_45 = arith.constant 0.00999999977 : f32
    %63 = vector.broadcast %cst_45 : f32 to vector<16x128xf32>
    %64 = arith.mulf %63, %60 : vector<16x128xf32>
    %65 = arith.select %62, %60, %64 : vector<16x128xi1>, vector<16x128xf32>
    %c5 = arith.constant 5 : index
    %c0_46 = arith.constant 0 : index
    %c0_47 = arith.constant 0 : index
    %66 = vector.load %arg5[%c5, %c0_46, %c0_47] : memref<10x128x128xf32, #tpu.memory_space<vmem>>, vector<1x128x128xf32>
    %67 = vector.shape_cast %66 : vector<1x128x128xf32> to vector<128x128xf32>
    %cst_48 = arith.constant dense<0.000000e+00> : vector<16x128xf32>
    %68 = tpu.matmul %65, %67, %cst_48 {dimension_numbers = #tpu.dot_dimension_numbers<[1], [0], [0], [1], [0, 0, 1, 1], [], []>} : vector<16x128xf32>, vector<128x128xf32>, vector<16x128xf32> -> vector<16x128xf32>
    %c5_49 = arith.constant 5 : index
    %c0_50 = arith.constant 0 : index
    %c0_51 = arith.constant 0 : index
    %69 = vector.load %arg6[%c5_49, %c0_50, %c0_51] : memref<10x1x128xf32, #tpu.memory_space<vmem>>, vector<1x1x128xf32>
    %70 = vector.shape_cast %69 : vector<1x1x128xf32> to vector<1x128xf32>
    %71 = vector.broadcast %70 : vector<1x128xf32> to vector<16x128xf32>
    %72 = arith.addf %68, %71 : vector<16x128xf32>
    %cst_52 = arith.constant 0.000000e+00 : f32
    %73 = vector.broadcast %cst_52 : f32 to vector<16x128xf32>
    %74 = arith.cmpf ogt, %72, %73 : vector<16x128xf32>
    %cst_53 = arith.constant 0.00999999977 : f32
    %75 = vector.broadcast %cst_53 : f32 to vector<16x128xf32>
    %76 = arith.mulf %75, %72 : vector<16x128xf32>
    %77 = arith.select %74, %72, %76 : vector<16x128xi1>, vector<16x128xf32>
    %c6 = arith.constant 6 : index
    %c0_54 = arith.constant 0 : index
    %c0_55 = arith.constant 0 : index
    %78 = vector.load %arg5[%c6, %c0_54, %c0_55] : memref<10x128x128xf32, #tpu.memory_space<vmem>>, vector<1x128x128xf32>
    %79 = vector.shape_cast %78 : vector<1x128x128xf32> to vector<128x128xf32>
    %cst_56 = arith.constant dense<0.000000e+00> : vector<16x128xf32>
    %80 = tpu.matmul %77, %79, %cst_56 {dimension_numbers = #tpu.dot_dimension_numbers<[1], [0], [0], [1], [0, 0, 1, 1], [], []>} : vector<16x128xf32>, vector<128x128xf32>, vector<16x128xf32> -> vector<16x128xf32>
    %c6_57 = arith.constant 6 : index
    %c0_58 = arith.constant 0 : index
    %c0_59 = arith.constant 0 : index
    %81 = vector.load %arg6[%c6_57, %c0_58, %c0_59] : memref<10x1x128xf32, #tpu.memory_space<vmem>>, vector<1x1x128xf32>
    %82 = vector.shape_cast %81 : vector<1x1x128xf32> to vector<1x128xf32>
    %83 = vector.broadcast %82 : vector<1x128xf32> to vector<16x128xf32>
    %84 = arith.addf %80, %83 : vector<16x128xf32>
    %cst_60 = arith.constant 0.000000e+00 : f32
    %85 = vector.broadcast %cst_60 : f32 to vector<16x128xf32>
    %86 = arith.cmpf ogt, %84, %85 : vector<16x128xf32>
    %cst_61 = arith.constant 0.00999999977 : f32
    %87 = vector.broadcast %cst_61 : f32 to vector<16x128xf32>
    %88 = arith.mulf %87, %84 : vector<16x128xf32>
    %89 = arith.select %86, %84, %88 : vector<16x128xi1>, vector<16x128xf32>
    %c7 = arith.constant 7 : index
    %c0_62 = arith.constant 0 : index
    %c0_63 = arith.constant 0 : index
    %90 = vector.load %arg5[%c7, %c0_62, %c0_63] : memref<10x128x128xf32, #tpu.memory_space<vmem>>, vector<1x128x128xf32>
    %91 = vector.shape_cast %90 : vector<1x128x128xf32> to vector<128x128xf32>
    %cst_64 = arith.constant dense<0.000000e+00> : vector<16x128xf32>
    %92 = tpu.matmul %89, %91, %cst_64 {dimension_numbers = #tpu.dot_dimension_numbers<[1], [0], [0], [1], [0, 0, 1, 1], [], []>} : vector<16x128xf32>, vector<128x128xf32>, vector<16x128xf32> -> vector<16x128xf32>
    %c7_65 = arith.constant 7 : index
    %c0_66 = arith.constant 0 : index
    %c0_67 = arith.constant 0 : index
    %93 = vector.load %arg6[%c7_65, %c0_66, %c0_67] : memref<10x1x128xf32, #tpu.memory_space<vmem>>, vector<1x1x128xf32>
    %94 = vector.shape_cast %93 : vector<1x1x128xf32> to vector<1x128xf32>
    %95 = vector.broadcast %94 : vector<1x128xf32> to vector<16x128xf32>
    %96 = arith.addf %92, %95 : vector<16x128xf32>
    %cst_68 = arith.constant 0.000000e+00 : f32
    %97 = vector.broadcast %cst_68 : f32 to vector<16x128xf32>
    %98 = arith.cmpf ogt, %96, %97 : vector<16x128xf32>
    %cst_69 = arith.constant 0.00999999977 : f32
    %99 = vector.broadcast %cst_69 : f32 to vector<16x128xf32>
    %100 = arith.mulf %99, %96 : vector<16x128xf32>
    %101 = arith.select %98, %96, %100 : vector<16x128xi1>, vector<16x128xf32>
    %cst_70 = arith.constant dense<0.000000e+00> : vector<32x128xf32>
    %102 = tpu.matmul %4, %101, %cst_70 {dimension_numbers = #tpu.dot_dimension_numbers<[1], [0], [0], [1], [0, 0, 1, 1], [], []>} : vector<32x16xf32>, vector<16x128xf32>, vector<32x128xf32> -> vector<32x128xf32>
    %c0_71 = arith.constant 0 : index
    %c0_72 = arith.constant 0 : index
    %c0_73 = arith.constant 0 : index
    %103 = vector.load %arg5[%c0_71, %c0_72, %c0_73] : memref<10x128x128xf32, #tpu.memory_space<vmem>>, vector<1x128x128xf32>
    %104 = vector.shape_cast %103 : vector<1x128x128xf32> to vector<128x128xf32>
    %cst_74 = arith.constant dense<0.000000e+00> : vector<32x128xf32>
    %105 = tpu.matmul %102, %104, %cst_74 {dimension_numbers = #tpu.dot_dimension_numbers<[1], [0], [0], [1], [0, 0, 1, 1], [], []>} : vector<32x128xf32>, vector<128x128xf32>, vector<32x128xf32> -> vector<32x128xf32>
    %c0_75 = arith.constant 0 : index
    %c0_76 = arith.constant 0 : index
    %c0_77 = arith.constant 0 : index
    %106 = vector.load %arg6[%c0_75, %c0_76, %c0_77] : memref<10x1x128xf32, #tpu.memory_space<vmem>>, vector<1x1x128xf32>
    %107 = vector.shape_cast %106 : vector<1x1x128xf32> to vector<1x128xf32>
    %108 = vector.broadcast %107 : vector<1x128xf32> to vector<32x128xf32>
    %109 = arith.addf %105, %108 : vector<32x128xf32>
    %cst_78 = arith.constant 0.000000e+00 : f32
    %110 = vector.broadcast %cst_78 : f32 to vector<32x128xf32>
    %111 = arith.cmpf ogt, %109, %110 : vector<32x128xf32>
    %cst_79 = arith.constant 0.00999999977 : f32
    %112 = vector.broadcast %cst_79 : f32 to vector<32x128xf32>
    %113 = arith.mulf %112, %109 : vector<32x128xf32>
    %114 = arith.select %111, %109, %113 : vector<32x128xi1>, vector<32x128xf32>
    %c1_80 = arith.constant 1 : index
    %c0_81 = arith.constant 0 : index
    %c0_82 = arith.constant 0 : index
    %115 = vector.load %arg5[%c1_80, %c0_81, %c0_82] : memref<10x128x128xf32, #tpu.memory_space<vmem>>, vector<1x128x128xf32>
    %116 = vector.shape_cast %115 : vector<1x128x128xf32> to vector<128x128xf32>
    %cst_83 = arith.constant dense<0.000000e+00> : vector<32x128xf32>
    %117 = tpu.matmul %114, %116, %cst_83 {dimension_numbers = #tpu.dot_dimension_numbers<[1], [0], [0], [1], [0, 0, 1, 1], [], []>} : vector<32x128xf32>, vector<128x128xf32>, vector<32x128xf32> -> vector<32x128xf32>
    %c1_84 = arith.constant 1 : index
    %c0_85 = arith.constant 0 : index
    %c0_86 = arith.constant 0 : index
    %118 = vector.load %arg6[%c1_84, %c0_85, %c0_86] : memref<10x1x128xf32, #tpu.memory_space<vmem>>, vector<1x1x128xf32>
    %119 = vector.shape_cast %118 : vector<1x1x128xf32> to vector<1x128xf32>
    %120 = vector.broadcast %119 : vector<1x128xf32> to vector<32x128xf32>
    %121 = arith.addf %117, %120 : vector<32x128xf32>
    %cst_87 = arith.constant 0.000000e+00 : f32
    %122 = vector.broadcast %cst_87 : f32 to vector<32x128xf32>
    %123 = arith.cmpf ogt, %121, %122 : vector<32x128xf32>
    %cst_88 = arith.constant 0.00999999977 : f32
    %124 = vector.broadcast %cst_88 : f32 to vector<32x128xf32>
    %125 = arith.mulf %124, %121 : vector<32x128xf32>
    %126 = arith.select %123, %121, %125 : vector<32x128xi1>, vector<32x128xf32>
    %c2_89 = arith.constant 2 : index
    %c0_90 = arith.constant 0 : index
    %c0_91 = arith.constant 0 : index
    %127 = vector.load %arg5[%c2_89, %c0_90, %c0_91] : memref<10x128x128xf32, #tpu.memory_space<vmem>>, vector<1x128x128xf32>
    %128 = vector.shape_cast %127 : vector<1x128x128xf32> to vector<128x128xf32>
    %cst_92 = arith.constant dense<0.000000e+00> : vector<32x128xf32>
    %129 = tpu.matmul %126, %128, %cst_92 {dimension_numbers = #tpu.dot_dimension_numbers<[1], [0], [0], [1], [0, 0, 1, 1], [], []>} : vector<32x128xf32>, vector<128x128xf32>, vector<32x128xf32> -> vector<32x128xf32>
    %c2_93 = arith.constant 2 : index
    %c0_94 = arith.constant 0 : index
    %c0_95 = arith.constant 0 : index
    %130 = vector.load %arg6[%c2_93, %c0_94, %c0_95] : memref<10x1x128xf32, #tpu.memory_space<vmem>>, vector<1x1x128xf32>
    %131 = vector.shape_cast %130 : vector<1x1x128xf32> to vector<1x128xf32>
    %132 = vector.broadcast %131 : vector<1x128xf32> to vector<32x128xf32>
    %133 = arith.addf %129, %132 : vector<32x128xf32>
    %cst_96 = arith.constant 0.000000e+00 : f32
    %134 = vector.broadcast %cst_96 : f32 to vector<32x128xf32>
    %135 = arith.cmpf ogt, %133, %134 : vector<32x128xf32>
    %cst_97 = arith.constant 0.00999999977 : f32
    %136 = vector.broadcast %cst_97 : f32 to vector<32x128xf32>
    %137 = arith.mulf %136, %133 : vector<32x128xf32>
    %138 = arith.select %135, %133, %137 : vector<32x128xi1>, vector<32x128xf32>
    %c3_98 = arith.constant 3 : index
    %c0_99 = arith.constant 0 : index
    %c0_100 = arith.constant 0 : index
    %139 = vector.load %arg5[%c3_98, %c0_99, %c0_100] : memref<10x128x128xf32, #tpu.memory_space<vmem>>, vector<1x128x128xf32>
    %140 = vector.shape_cast %139 : vector<1x128x128xf32> to vector<128x128xf32>
    %cst_101 = arith.constant dense<0.000000e+00> : vector<32x128xf32>
    %141 = tpu.matmul %138, %140, %cst_101 {dimension_numbers = #tpu.dot_dimension_numbers<[1], [0], [0], [1], [0, 0, 1, 1], [], []>} : vector<32x128xf32>, vector<128x128xf32>, vector<32x128xf32> -> vector<32x128xf32>
    %c3_102 = arith.constant 3 : index
    %c0_103 = arith.constant 0 : index
    %c0_104 = arith.constant 0 : index
    %142 = vector.load %arg6[%c3_102, %c0_103, %c0_104] : memref<10x1x128xf32, #tpu.memory_space<vmem>>, vector<1x1x128xf32>
    %143 = vector.shape_cast %142 : vector<1x1x128xf32> to vector<1x128xf32>
    %144 = vector.broadcast %143 : vector<1x128xf32> to vector<32x128xf32>
    %145 = arith.addf %141, %144 : vector<32x128xf32>
    %cst_105 = arith.constant 0.000000e+00 : f32
    %146 = vector.broadcast %cst_105 : f32 to vector<32x128xf32>
    %147 = arith.cmpf ogt, %145, %146 : vector<32x128xf32>
    %cst_106 = arith.constant 0.00999999977 : f32
    %148 = vector.broadcast %cst_106 : f32 to vector<32x128xf32>
    %149 = arith.mulf %148, %145 : vector<32x128xf32>
    %150 = arith.select %147, %145, %149 : vector<32x128xi1>, vector<32x128xf32>
    %cst_107 = arith.constant dense<0.000000e+00> : vector<16x128xf32>
    %151 = tpu.matmul %2, %150, %cst_107 {dimension_numbers = #tpu.dot_dimension_numbers<[1], [0], [0], [1], [0, 0, 1, 1], [], []>} : vector<16x32xf32>, vector<32x128xf32>, vector<16x128xf32> -> vector<16x128xf32>
    %c4_108 = arith.constant 4 : index
    %c0_109 = arith.constant 0 : index
    %c0_110 = arith.constant 0 : index
    %152 = vector.load %arg5[%c4_108, %c0_109, %c0_110] : memref<10x128x128xf32, #tpu.memory_space<vmem>>, vector<1x128x128xf32>
    %153 = vector.shape_cast %152 : vector<1x128x128xf32> to vector<128x128xf32>
    %cst_111 = arith.constant dense<0.000000e+00> : vector<16x128xf32>
    %154 = tpu.matmul %151, %153, %cst_111 {dimension_numbers = #tpu.dot_dimension_numbers<[1], [0], [0], [1], [0, 0, 1, 1], [], []>} : vector<16x128xf32>, vector<128x128xf32>, vector<16x128xf32> -> vector<16x128xf32>
    %c4_112 = arith.constant 4 : index
    %c0_113 = arith.constant 0 : index
    %c0_114 = arith.constant 0 : index
    %155 = vector.load %arg6[%c4_112, %c0_113, %c0_114] : memref<10x1x128xf32, #tpu.memory_space<vmem>>, vector<1x1x128xf32>
    %156 = vector.shape_cast %155 : vector<1x1x128xf32> to vector<1x128xf32>
    %157 = vector.broadcast %156 : vector<1x128xf32> to vector<16x128xf32>
    %158 = arith.addf %154, %157 : vector<16x128xf32>
    %cst_115 = arith.constant 0.000000e+00 : f32
    %159 = vector.broadcast %cst_115 : f32 to vector<16x128xf32>
    %160 = arith.cmpf ogt, %158, %159 : vector<16x128xf32>
    %cst_116 = arith.constant 0.00999999977 : f32
    %161 = vector.broadcast %cst_116 : f32 to vector<16x128xf32>
    %162 = arith.mulf %161, %158 : vector<16x128xf32>
    %163 = arith.select %160, %158, %162 : vector<16x128xi1>, vector<16x128xf32>
    %c5_117 = arith.constant 5 : index
    %c0_118 = arith.constant 0 : index
    %c0_119 = arith.constant 0 : index
    %164 = vector.load %arg5[%c5_117, %c0_118, %c0_119] : memref<10x128x128xf32, #tpu.memory_space<vmem>>, vector<1x128x128xf32>
    %165 = vector.shape_cast %164 : vector<1x128x128xf32> to vector<128x128xf32>
    %cst_120 = arith.constant dense<0.000000e+00> : vector<16x128xf32>
    %166 = tpu.matmul %163, %165, %cst_120 {dimension_numbers = #tpu.dot_dimension_numbers<[1], [0], [0], [1], [0, 0, 1, 1], [], []>} : vector<16x128xf32>, vector<128x128xf32>, vector<16x128xf32> -> vector<16x128xf32>
    %c5_121 = arith.constant 5 : index
    %c0_122 = arith.constant 0 : index
    %c0_123 = arith.constant 0 : index
    %167 = vector.load %arg6[%c5_121, %c0_122, %c0_123] : memref<10x1x128xf32, #tpu.memory_space<vmem>>, vector<1x1x128xf32>
    %168 = vector.shape_cast %167 : vector<1x1x128xf32> to vector<1x128xf32>
    %169 = vector.broadcast %168 : vector<1x128xf32> to vector<16x128xf32>
    %170 = arith.addf %166, %169 : vector<16x128xf32>
    %cst_124 = arith.constant 0.000000e+00 : f32
    %171 = vector.broadcast %cst_124 : f32 to vector<16x128xf32>
    %172 = arith.cmpf ogt, %170, %171 : vector<16x128xf32>
    %cst_125 = arith.constant 0.00999999977 : f32
    %173 = vector.broadcast %cst_125 : f32 to vector<16x128xf32>
    %174 = arith.mulf %173, %170 : vector<16x128xf32>
    %175 = arith.select %172, %170, %174 : vector<16x128xi1>, vector<16x128xf32>
    %c8 = arith.constant 8 : index
    %c0_126 = arith.constant 0 : index
    %c0_127 = arith.constant 0 : index
    %176 = vector.load %arg5[%c8, %c0_126, %c0_127] : memref<10x128x128xf32, #tpu.memory_space<vmem>>, vector<1x128x128xf32>
    %177 = vector.shape_cast %176 : vector<1x128x128xf32> to vector<128x128xf32>
    %cst_128 = arith.constant dense<0.000000e+00> : vector<16x128xf32>
    %178 = tpu.matmul %175, %177, %cst_128 {dimension_numbers = #tpu.dot_dimension_numbers<[1], [0], [0], [1], [0, 0, 1, 1], [], []>} : vector<16x128xf32>, vector<128x128xf32>, vector<16x128xf32> -> vector<16x128xf32>
    %c8_129 = arith.constant 8 : index
    %c0_130 = arith.constant 0 : index
    %c0_131 = arith.constant 0 : index
    %179 = vector.load %arg6[%c8_129, %c0_130, %c0_131] : memref<10x1x128xf32, #tpu.memory_space<vmem>>, vector<1x1x128xf32>
    %180 = vector.shape_cast %179 : vector<1x1x128xf32> to vector<1x128xf32>
    %181 = vector.broadcast %180 : vector<1x128xf32> to vector<16x128xf32>
    %182 = arith.addf %178, %181 : vector<16x128xf32>
    %cst_132 = arith.constant 0.000000e+00 : f32
    %183 = vector.broadcast %cst_132 : f32 to vector<16x128xf32>
    %184 = arith.cmpf ogt, %182, %183 : vector<16x128xf32>
    %cst_133 = arith.constant 0.00999999977 : f32
    %185 = vector.broadcast %cst_133 : f32 to vector<16x128xf32>
    %186 = arith.mulf %185, %182 : vector<16x128xf32>
    %187 = arith.select %184, %182, %186 : vector<16x128xi1>, vector<16x128xf32>
    %c9 = arith.constant 9 : index
    %c0_134 = arith.constant 0 : index
    %c0_135 = arith.constant 0 : index
    %188 = vector.load %arg5[%c9, %c0_134, %c0_135] : memref<10x128x128xf32, #tpu.memory_space<vmem>>, vector<1x128x128xf32>
    %189 = vector.shape_cast %188 : vector<1x128x128xf32> to vector<128x128xf32>
    %cst_136 = arith.constant dense<0.000000e+00> : vector<16x128xf32>
    %190 = tpu.matmul %187, %189, %cst_136 {dimension_numbers = #tpu.dot_dimension_numbers<[1], [0], [0], [1], [0, 0, 1, 1], [], []>} : vector<16x128xf32>, vector<128x128xf32>, vector<16x128xf32> -> vector<16x128xf32>
    %c9_137 = arith.constant 9 : index
    %c0_138 = arith.constant 0 : index
    %c0_139 = arith.constant 0 : index
    %191 = vector.load %arg6[%c9_137, %c0_138, %c0_139] : memref<10x1x128xf32, #tpu.memory_space<vmem>>, vector<1x1x128xf32>
    %192 = vector.shape_cast %191 : vector<1x1x128xf32> to vector<1x128xf32>
    %193 = vector.broadcast %192 : vector<1x128xf32> to vector<16x128xf32>
    %194 = arith.addf %190, %193 : vector<16x128xf32>
    %cst_140 = arith.constant 0.000000e+00 : f32
    %195 = vector.broadcast %cst_140 : f32 to vector<16x128xf32>
    %196 = arith.cmpf ogt, %194, %195 : vector<16x128xf32>
    %cst_141 = arith.constant 0.00999999977 : f32
    %197 = vector.broadcast %cst_141 : f32 to vector<16x128xf32>
    %198 = arith.mulf %197, %194 : vector<16x128xf32>
    %199 = arith.select %196, %194, %198 : vector<16x128xi1>, vector<16x128xf32>
    %c0_142 = arith.constant 0 : index
    %c0_143 = arith.constant 0 : index
    %200 = vector.load %arg7[%c0_142, %c0_143] : memref<16x128xf32, #tpu.memory_space<vmem>>, vector<16x128xf32>
    tpu.vector_store %arg7[%c0_142, %c0_143], %199 {strides = array<i32>} : memref<16x128xf32, #tpu.memory_space<vmem>>, vector<16x128xf32>,
    return
  }
  func.func @transform_0(%arg0: i32) -> (i32, i32) {
    %c0_i32 = arith.constant 0 : i32
    %c0_i32_0 = arith.constant 0 : i32
    %c0_i32_1 = arith.constant 0 : i32
    return %c0_i32, %c0_i32_0 : i32, i32
  }
  func.func @transform_1(%arg0: i32) -> (i32, i32) {
    %c0_i32 = arith.constant 0 : i32
    %c0_i32_0 = arith.constant 0 : i32
    %c0_i32_1 = arith.constant 0 : i32
    return %c0_i32, %c0_i32_0 : i32, i32
  }
  func.func @transform_2(%arg0: i32) -> (i32, i32) {
    %c0_i32 = arith.constant 0 : i32
    %c0_i32_0 = arith.constant 0 : i32
    %c0_i32_1 = arith.constant 0 : i32
    return %c0_i32, %c0_i32_0 : i32, i32
  }
  func.func @transform_3(%arg0: i32) -> (i32, i32) {
    %c0_i32 = arith.constant 0 : i32
    %c0_i32_0 = arith.constant 0 : i32
    %c0_i32_1 = arith.constant 0 : i32
    return %c0_i32, %c0_i32_0 : i32, i32
  }
  func.func @transform_4(%arg0: i32) -> (i32, i32, i32) {
    %c0_i32 = arith.constant 0 : i32
    %c0_i32_0 = arith.constant 0 : i32
    %c0_i32_1 = arith.constant 0 : i32
    %c0_i32_2 = arith.constant 0 : i32
    return %c0_i32, %c0_i32_0, %c0_i32_1 : i32, i32, i32
  }
  func.func @transform_5(%arg0: i32) -> (i32, i32, i32) {
    %c0_i32 = arith.constant 0 : i32
    %c0_i32_0 = arith.constant 0 : i32
    %c0_i32_1 = arith.constant 0 : i32
    %c0_i32_2 = arith.constant 0 : i32
    return %c0_i32, %c0_i32_0, %c0_i32_1 : i32, i32, i32
  }
  func.func @transform_6(%arg0: i32) -> (i32, i32) {
    %c0_i32 = arith.constant 0 : i32
    %c0_i32_0 = arith.constant 0 : i32
    %c0_i32_1 = arith.constant 0 : i32
    return %c0_i32, %c0_i32_0 : i32, i32
  }
}

</mosaic_0001>

<llo_original>
// kernel: run.1
$region0: #{run.1}
  #allocation0 [shape = 'u32[]', space=smem, size = 0x4, offset = 0x4, fixed_abs, tag = 'smem constant byte address 0x4 - core index']
  #allocation1 [shape = 'u32[144,128]{1,0:T(1,128)}', space=vmem, size = 0x12000, scoped, tag = 'internal scratch']
  %s0 = inlined_call_operand.vmem [shape: f32[32,128], index: 0, kind: input, shape index: {}]
  %s1 = inlined_call_operand.vmem [shape: f32[16,128], index: 1, kind: input, shape index: {}]
  %s2 = inlined_call_operand.vmem [shape: bf16[16,32], index: 2, kind: input, shape index: {}]
  %s3 = inlined_call_operand.vmem [shape: bf16[32,16], index: 3, kind: input, shape index: {}]
  %s4 = inlined_call_operand.hbm [shape: f32[10,128,128], index: 4, kind: input, shape index: {}]
  %s5 = inlined_call_operand.vmem [shape: f32[10,1,128], index: 5, kind: input, shape index: {}]
  %s6 = inlined_call_operand.vmem [shape: f32[16,128], index: 6, kind: output, shape index: {}]
  %s7 = sld [smem:[#allocation0]]
  $region38: #{run.1} parent=0
    _
  %s9 = ssub.s32 1, %s7
  %s10 = scalar_select 0, %s9, %s7
  $region1: #{run.1} parent=0
    #allocation2 [shape = 'u8[655360]{0}', space=vmem, size = 0xa0000, scoped, tag = 'input window, operand 4, single buffered']
    #allocation3 [shape = 's32[1]{0}', space=sflag, size = 0x4, scoped, tag = 'scoped memory for run.1']
    %11 = vsyncpa [#allocation3], 0
    // Predicated region
    $region2: #{run.1} parent=1 // pred_check
      _
    $region3: #{run.1} parent=1 // pred_check_branch
      %13 = sbr.rel (0) target = $region5
    $region4: #{run.1} parent=1 // pred_region
      _
    $region5: #{run.1} parent=1 // pred_fallthru
      _
    // Predicated region
    $region6: #{run.1} parent=1 // pred_check
      _
    $region7: #{run.1} parent=1 // pred_check_branch
      %15 = sbr.rel (0) target = $region9
    $region8: #{run.1} parent=1 // pred_region
      _
    $region9: #{run.1} parent=1 // pred_fallthru
      _
    // Predicated region
    $region10: #{run.1} parent=1 // pred_check
      _
    $region11: #{run.1} parent=1 // pred_check_branch
      %17 = sbr.rel (0) target = $region13
    $region12: #{run.1} parent=1 // pred_region
      _
    $region13: #{run.1} parent=1 // pred_fallthru
      _
    // Predicated region
    $region14: #{run.1} parent=1 // pred_check
      _
    $region15: #{run.1} parent=1 // pred_check_branch
      %19 = sbr.rel (0) target = $region17
    $region16: #{run.1} parent=1 // pred_region
      _
    $region17: #{run.1} parent=1 // pred_fallthru
      _
    // Predicated region
    $region18: #{run.1} parent=1 // pred_check
      _
    $region19: #{run.1} parent=1 // pred_check_branch
      %21 = sbr.rel (0) target = $region21
    $region20: #{run.1} parent=1 // pred_region
      %s23 = ssub.s32 20480, 20480
      %24 = vsyncadd [#allocation3], %s23
      %s25 = sshll.u32 [#allocation2], 4
      %s26 = int_to_ptr.vmem [resolvable:$true] %s25
      %31 = dma.hbm_to_vmem [thread:$0]  %s4, 20480, %s26, [#allocation3], 128, 128, 8
    $region21: #{run.1} parent=1 // pred_fallthru
      _
    // Predicated region
    $region22: #{run.1} parent=1 // pred_check
      _
    $region23: #{run.1} parent=1 // pred_check_branch
      %33 = sbr.rel (0) target = $region25
    $region24: #{run.1} parent=1 // pred_region
      _
    $region25: #{run.1} parent=1 // pred_fallthru
      _
    // Predicated region
    $region26: #{run.1} parent=1 // pred_check
      _
    $region27: #{run.1} parent=1 // pred_check_branch
      %35 = sbr.rel (0) target = $region29
    $region28: #{run.1} parent=1 // pred_region
      %36 = dma.done [#allocation3], 20480
    $region29: #{run.1} parent=1 // pred_fallthru
      _
    %v37 = vld [vmem:[%s0] sm:$0xff]
    %v38 = vld [vmem:[%s0 + $0x8] sm:$0xff]
    %v39 = vld [vmem:[%s0 + $0x10] sm:$0xff]
    %v40 = vld [vmem:[%s0 + $0x18] sm:$0xff]
    %v41 = vld [vmem:[%s2] sm:$0xf]
    %v42 = vld [vmem:[%s2 + $0x4] sm:$0xf]
    %v43 = vunpack.c.l.bf16 %v41
    %v44 = vunpack.c.l.bf16 %v42
    %v45 = vld [vmem:[%s3] sm:$0xf]
    %v46 = vld [vmem:[%s3 + $0x4] sm:$0xf]
    %v47 = vld [vmem:[%s3 + $0x8] sm:$0xf]
    %v48 = vld [vmem:[%s3 + $0xc] sm:$0xf]
    %v49 = vunpack.c.l.bf16 %v45
    %v50 = vunpack.c.l.bf16 %v46
    %v51 = vunpack.c.l.bf16 %v47
    %v52 = vunpack.c.l.bf16 %v48
    %v53 = vld [vmem:[#allocation2] sm:$0xff]
    %v54 = vld [vmem:[#allocation2 + $0x8] sm:$0xff]
    %v55 = vld [vmem:[#allocation2 + $0x10] sm:$0xff]
    %v56 = vld [vmem:[#allocation2 + $0x18] sm:$0xff]
    %v57 = vld [vmem:[#allocation2 + $0x20] sm:$0xff]
    %v58 = vld [vmem:[#allocation2 + $0x28] sm:$0xff]
    %v59 = vld [vmem:[#allocation2 + $0x30] sm:$0xff]
    %v60 = vld [vmem:[#allocation2 + $0x38] sm:$0xff]
    %v61 = vld [vmem:[#allocation2 + $0x40] sm:$0xff]
    %v62 = vld [vmem:[#allocation2 + $0x48] sm:$0xff]
    %v63 = vld [vmem:[#allocation2 + $0x50] sm:$0xff]
    %v64 = vld [vmem:[#allocation2 + $0x58] sm:$0xff]
    %v65 = vld [vmem:[#allocation2 + $0x60] sm:$0xff]
    %v66 = vld [vmem:[#allocation2 + $0x68] sm:$0xff]
    %v67 = vld [vmem:[#allocation2 + $0x70] sm:$0xff]
    %v68 = vld [vmem:[#allocation2 + $0x78] sm:$0xff]
    %v69 = vld [vmem:[%s5] sm:$0x1]
    %v71 = vlaneseq
    %v72 = vshrl.u32 %v71, 7
    %v73 = vsub.s32 0, %v72
    %v74 = vrot.slane %v69, %v73
    %76 = vmatprep.subr.mxu0 0.0
    %77 = vmatpush1.msra.mxu0 %v53
    %78 = vmatprep.subr.mxu0 0.0
    %79 = vmatpush1.msra.mxu0 %v54
    %80 = vmatprep.subr.mxu0 0.0
    %81 = vmatpush1.msra.mxu0 %v55
    %82 = vmatprep.subr.mxu0 0.0
    %83 = vmatpush1.msra.mxu0 %v56
    %84 = vmatprep.subr.mxu0 0.0
    %85 = vmatpush1.msra.mxu0 %v57
    %86 = vmatprep.subr.mxu0 0.0
    %87 = vmatpush1.msra.mxu0 %v58
    %88 = vmatprep.subr.mxu0 0.0
    %89 = vmatpush1.msra.mxu0 %v59
    %90 = vmatprep.subr.mxu0 0.0
    %91 = vmatpush1.msra.mxu0 %v60
    %92 = vmatprep.subr.mxu0 0.0
    %93 = vmatpush1.msra.mxu0 %v61
    %94 = vmatprep.subr.mxu0 0.0
    %95 = vmatpush1.msra.mxu0 %v62
    %96 = vmatprep.subr.mxu0 0.0
    %97 = vmatpush1.msra.mxu0 %v63
    %98 = vmatprep.subr.mxu0 0.0
    %99 = vmatpush1.msra.mxu0 %v64
    %100 = vmatprep.subr.mxu0 0.0
    %101 = vmatpush1.msra.mxu0 %v65
    %102 = vmatprep.subr.mxu0 0.0
    %103 = vmatpush1.msra.mxu0 %v66
    %104 = vmatprep.subr.mxu0 0.0
    %105 = vmatpush1.msra.mxu0 %v67
    %106 = vmatprep.subr.mxu0 0.0
    %107 = vmatpush1.msra.mxu0 %v68
    %108 = vmatprep.subr.mxu0 0.0
    %109 = vmatpush1.msra.mxu0 0.0
    %110 = vmatprep.subr.mxu0 0.0
    %111 = vmatpush1.msra.mxu0 0.0
    %112 = vmatprep.subr.mxu0 0.0
    %113 = vmatpush1.msra.mxu0 0.0
    %114 = vmatprep.subr.mxu0 0.0
    %115 = vmatpush1.msra.mxu0 0.0
    %116 = vmatprep.subr.mxu0 0.0
    %117 = vmatpush1.msra.mxu0 0.0
    %118 = vmatprep.subr.mxu0 0.0
    %119 = vmatpush1.msra.mxu0 0.0
    %120 = vmatprep.subr.mxu0 0.0
    %121 = vmatpush1.msra.mxu0 0.0
    %122 = vmatprep.subr.mxu0 0.0
    %123 = vmatpush1.msra.mxu0 0.0
    %124 = vmatprep.subr.mxu0 0.0
    %125 = vmatpush1.msra.mxu0 0.0
    %126 = vmatprep.subr.mxu0 0.0
    %127 = vmatpush1.msra.mxu0 0.0
    %128 = vmatprep.subr.mxu0 0.0
    %129 = vmatpush1.msra.mxu0 0.0
    %130 = vmatprep.subr.mxu0 0.0
    %131 = vmatpush1.msra.mxu0 0.0
    %132 = vmatprep.subr.mxu0 0.0
    %133 = vmatpush1.msra.mxu0 0.0
    %134 = vmatprep.subr.mxu0 0.0
    %135 = vmatpush1.msra.mxu0 0.0
    %136 = vmatprep.subr.mxu0 0.0
    %137 = vmatpush1.msra.mxu0 0.0
    %138 = vmatprep.subr.mxu0 0.0
    %139 = vmatpush1.msra.mxu0 0.0
    %140 = vmatprep.mubr.f32.mxu0 0.0
    %141 = vmatmul.mubr.f32.gmra.mrb[0].mxu0 %v37
    %v142 = vpop.f32.mrb[0].mxu0
    %v143 = vadd.f32 %v74, %v142
    %v144 = vpop.f32.mrb[0].mxu0
    %145 = vmatprep.mubr.f32.mxu0 0.0
    %146 = vmatmul.mubr.f32.gmra.mrb[0].mxu0 %v38
    %v147 = vpop.f32.mrb[0].mxu0
    %v148 = vadd.f32 %v74, %v147
    %v149 = vpop.f32.mrb[0].mxu0
    %150 = vmatprep.mubr.f32.mxu0 0.0
    %151 = vmatmul.mubr.f32.gmra.mrb[0].mxu0 %v39
    %v152 = vpop.f32.mrb[0].mxu0
    %v153 = vadd.f32 %v74, %v152
    %v154 = vpop.f32.mrb[0].mxu0
    %155 = vmatprep.mubr.f32.mxu0 0.0
    %156 = vmatmul.mubr.f32.gmra.mrb[0].mxu0 %v40
    %v157 = vpop.f32.mrb[0].mxu0
    %v158 = vadd.f32 %v74, %v157
    %v159 = vpop.f32.mrb[0].mxu0
    %160 = vdwg.mxu0
    %vm161 = vcmp.gt.f32.partialorder %v143, 0.0
    %vm162 = vcmp.gt.f32.partialorder %v148, 0.0
    %vm163 = vcmp.gt.f32.partialorder %v153, 0.0
    %vm164 = vcmp.gt.f32.partialorder %v158, 0.0
    %v165 = vmul.f32 %v143, 0.01
    %v166 = vmul.f32 %v148, 0.01
    %v167 = vmul.f32 %v153, 0.01
    %v168 = vmul.f32 %v158, 0.01
    %v169 = vsel %vm161, %v143, %v165
    %v170 = vsel %vm162, %v148, %v166
    %v171 = vsel %vm163, %v153, %v167
    %v172 = vsel %vm164, %v158, %v168
    %s173 = scalar_lea.vmem [#allocation2], 128
    %v174 = vld [vmem:[%s173] sm:$0xff]
    %v175 = vld [vmem:[%s173 + $0x8] sm:$0xff]
    %v176 = vld [vmem:[%s173 + $0x10] sm:$0xff]
    %v177 = vld [vmem:[%s173 + $0x18] sm:$0xff]
    %v178 = vld [vmem:[%s173 + $0x20] sm:$0xff]
    %v179 = vld [vmem:[%s173 + $0x28] sm:$0xff]
    %v180 = vld [vmem:[%s173 + $0x30] sm:$0xff]
    %v181 = vld [vmem:[%s173 + $0x38] sm:$0xff]
    %v182 = vld [vmem:[%s173 + $0x40] sm:$0xff]
    %v183 = vld [vmem:[%s173 + $0x48] sm:$0xff]
    %v184 = vld [vmem:[%s173 + $0x50] sm:$0xff]
    %v185 = vld [vmem:[%s173 + $0x58] sm:$0xff]
    %v186 = vld [vmem:[%s173 + $0x60] sm:$0xff]
    %v187 = vld [vmem:[%s173 + $0x68] sm:$0xff]
    %v188 = vld [vmem:[%s173 + $0x70] sm:$0xff]
    %v189 = vld [vmem:[%s173 + $0x78] sm:$0xff]
    %s190 = scalar_lea.vmem %s5, 1
    %v191 = vld [vmem:[%s190] sm:$0x1]
    %v193 = vlaneseq
    %v194 = vshrl.u32 %v193, 7
    %v195 = vsub.s32 0, %v194
    %v196 = vrot.slane %v191, %v195
    %198 = vmatprep.subr.mxu0 0.0
    %199 = vmatpush1.msra.mxu0 %v174
    %200 = vmatprep.subr.mxu0 0.0
    %201 = vmatpush1.msra.mxu0 %v175
    %202 = vmatprep.subr.mxu0 0.0
    %203 = vmatpush1.msra.mxu0 %v176
    %204 = vmatprep.subr.mxu0 0.0
    %205 = vmatpush1.msra.mxu0 %v177
    %206 = vmatprep.subr.mxu0 0.0
    %207 = vmatpush1.msra.mxu0 %v178
    %208 = vmatprep.subr.mxu0 0.0
    %209 = vmatpush1.msra.mxu0 %v179
    %210 = vmatprep.subr.mxu0 0.0
    %211 = vmatpush1.msra.mxu0 %v180
    %212 = vmatprep.subr.mxu0 0.0
    %213 = vmatpush1.msra.mxu0 %v181
    %214 = vmatprep.subr.mxu0 0.0
    %215 = vmatpush1.msra.mxu0 %v182
    %216 = vmatprep.subr.mxu0 0.0
    %217 = vmatpush1.msra.mxu0 %v183
    %218 = vmatprep.subr.mxu0 0.0
    %219 = vmatpush1.msra.mxu0 %v184
    %220 = vmatprep.subr.mxu0 0.0
    %221 = vmatpush1.msra.mxu0 %v185
    %222 = vmatprep.subr.mxu0 0.0
    %223 = vmatpush1.msra.mxu0 %v186
    %224 = vmatprep.subr.mxu0 0.0
    %225 = vmatpush1.msra.mxu0 %v187
    %226 = vmatprep.subr.mxu0 0.0
    %227 = vmatpush1.msra.mxu0 %v188
    %228 = vmatprep.subr.mxu0 0.0
    %229 = vmatpush1.msra.mxu0 %v189
    %230 = vmatprep.subr.mxu0 0.0
    %231 = vmatpush1.msra.mxu0 0.0
    %232 = vmatprep.subr.mxu0 0.0
    %233 = vmatpush1.msra.mxu0 0.0
    %234 = vmatprep.subr.mxu0 0.0
    %235 = vmatpush1.msra.mxu0 0.0
    %236 = vmatprep.subr.mxu0 0.0
    %237 = vmatpush1.msra.mxu0 0.0
    %238 = vmatprep.subr.mxu0 0.0
    %239 = vmatpush1.msra.mxu0 0.0
    %240 = vmatprep.subr.mxu0 0.0
    %241 = vmatpush1.msra.mxu0 0.0
    %242 = vmatprep.subr.mxu0 0.0
    %243 = vmatpush1.msra.mxu0 0.0
    %244 = vmatprep.subr.mxu0 0.0
    %245 = vmatpush1.msra.mxu0 0.0
    %246 = vmatprep.subr.mxu0 0.0
    %247 = vmatpush1.msra.mxu0 0.0
    %248 = vmatprep.subr.mxu0 0.0
    %249 = vmatpush1.msra.mxu0 0.0
    %250 = vmatprep.subr.mxu0 0.0
    %251 = vmatpush1.msra.mxu0 0.0
    %252 = vmatprep.subr.mxu0 0.0
    %253 = vmatpush1.msra.mxu0 0.0
    %254 = vmatprep.subr.mxu0 0.0
    %255 = vmatpush1.msra.mxu0 0.0
    %256 = vmatprep.subr.mxu0 0.0
    %257 = vmatpush1.msra.mxu0 0.0
    %258 = vmatprep.subr.mxu0 0.0
    %259 = vmatpush1.msra.mxu0 0.0
    %260 = vmatprep.subr.mxu0 0.0
    %261 = vmatpush1.msra.mxu0 0.0
    %262 = vmatprep.mubr.f32.mxu0 0.0
    %263 = vmatmul.mubr.f32.gmra.mrb[0].mxu0 %v169
    %v264 = vpop.f32.mrb[0].mxu0
    %v265 = vadd.f32 %v196, %v264
    %v266 = vpop.f32.mrb[0].mxu0
    %267 = vmatprep.mubr.f32.mxu0 0.0
    %268 = vmatmul.mubr.f32.gmra.mrb[0].mxu0 %v170
    %v269 = vpop.f32.mrb[0].mxu0
    %v270 = vadd.f32 %v196, %v269
    %v271 = vpop.f32.mrb[0].mxu0
    %272 = vmatprep.mubr.f32.mxu0 0.0
    %273 = vmatmul.mubr.f32.gmra.mrb[0].mxu0 %v171
    %v274 = vpop.f32.mrb[0].mxu0
    %v275 = vadd.f32 %v196, %v274
    %v276 = vpop.f32.mrb[0].mxu0
    %277 = vmatprep.mubr.f32.mxu0 0.0
    %278 = vmatmul.mubr.f32.gmra.mrb[0].mxu0 %v172
    %v279 = vpop.f32.mrb[0].mxu0
    %v280 = vadd.f32 %v196, %v279
    %v281 = vpop.f32.mrb[0].mxu0
    %282 = vdwg.mxu0
    %vm283 = vcmp.gt.f32.partialorder %v265, 0.0
    %vm284 = vcmp.gt.f32.partialorder %v270, 0.0
    %vm285 = vcmp.gt.f32.partialorder %v275, 0.0
    %vm286 = vcmp.gt.f32.partialorder %v280, 0.0
    %v287 = vmul.f32 %v265, 0.01
    %v288 = vmul.f32 %v270, 0.01
    %v289 = vmul.f32 %v275, 0.01
    %v290 = vmul.f32 %v280, 0.01
    %v291 = vsel %vm283, %v265, %v287
    %v292 = vsel %vm284, %v270, %v288
    %v293 = vsel %vm285, %v275, %v289
    %v294 = vsel %vm286, %v280, %v290
    %s295 = scalar_lea.vmem [#allocation2], 256
    %v296 = vld [vmem:[%s295] sm:$0xff]
    %v297 = vld [vmem:[%s295 + $0x8] sm:$0xff]
    %v298 = vld [vmem:[%s295 + $0x10] sm:$0xff]
    %v299 = vld [vmem:[%s295 + $0x18] sm:$0xff]
    %v300 = vld [vmem:[%s295 + $0x20] sm:$0xff]
    %v301 = vld [vmem:[%s295 + $0x28] sm:$0xff]
    %v302 = vld [vmem:[%s295 + $0x30] sm:$0xff]
    %v303 = vld [vmem:[%s295 + $0x38] sm:$0xff]
    %v304 = vld [vmem:[%s295 + $0x40] sm:$0xff]
    %v305 = vld [vmem:[%s295 + $0x48] sm:$0xff]
    %v306 = vld [vmem:[%s295 + $0x50] sm:$0xff]
    %v307 = vld [vmem:[%s295 + $0x58] sm:$0xff]
    %v308 = vld [vmem:[%s295 + $0x60] sm:$0xff]
    %v309 = vld [vmem:[%s295 + $0x68] sm:$0xff]
    %v310 = vld [vmem:[%s295 + $0x70] sm:$0xff]
    %v311 = vld [vmem:[%s295 + $0x78] sm:$0xff]
    %s312 = scalar_lea.vmem %s5, 2
    %v313 = vld [vmem:[%s312] sm:$0x1]
    %v315 = vlaneseq
    %v316 = vshrl.u32 %v315, 7
    %v317 = vsub.s32 0, %v316
    %v318 = vrot.slane %v313, %v317
    %320 = vmatprep.subr.mxu0 0.0
    %321 = vmatpush1.msra.mxu0 %v296
    %322 = vmatprep.subr.mxu0 0.0
    %323 = vmatpush1.msra.mxu0 %v297
    %324 = vmatprep.subr.mxu0 0.0
    %325 = vmatpush1.msra.mxu0 %v298
    %326 = vmatprep.subr.mxu0 0.0
    %327 = vmatpush1.msra.mxu0 %v299
    %328 = vmatprep.subr.mxu0 0.0
    %329 = vmatpush1.msra.mxu0 %v300
    %330 = vmatprep.subr.mxu0 0.0
    %331 = vmatpush1.msra.mxu0 %v301
    %332 = vmatprep.subr.mxu0 0.0
    %333 = vmatpush1.msra.mxu0 %v302
    %334 = vmatprep.subr.mxu0 0.0
    %335 = vmatpush1.msra.mxu0 %v303
    %336 = vmatprep.subr.mxu0 0.0
    %337 = vmatpush1.msra.mxu0 %v304
    %338 = vmatprep.subr.mxu0 0.0
    %339 = vmatpush1.msra.mxu0 %v305
    %340 = vmatprep.subr.mxu0 0.0
    %341 = vmatpush1.msra.mxu0 %v306
    %342 = vmatprep.subr.mxu0 0.0
    %343 = vmatpush1.msra.mxu0 %v307
    %344 = vmatprep.subr.mxu0 0.0
    %345 = vmatpush1.msra.mxu0 %v308
    %346 = vmatprep.subr.mxu0 0.0
    %347 = vmatpush1.msra.mxu0 %v309
    %348 = vmatprep.subr.mxu0 0.0
    %349 = vmatpush1.msra.mxu0 %v310
    %350 = vmatprep.subr.mxu0 0.0
    %351 = vmatpush1.msra.mxu0 %v311
    %352 = vmatprep.subr.mxu0 0.0
    %353 = vmatpush1.msra.mxu0 0.0
    %354 = vmatprep.subr.mxu0 0.0
    %355 = vmatpush1.msra.mxu0 0.0
    %356 = vmatprep.subr.mxu0 0.0
    %357 = vmatpush1.msra.mxu0 0.0
    %358 = vmatprep.subr.mxu0 0.0
    %359 = vmatpush1.msra.mxu0 0.0
    %360 = vmatprep.subr.mxu0 0.0
    %361 = vmatpush1.msra.mxu0 0.0
    %362 = vmatprep.subr.mxu0 0.0
    %363 = vmatpush1.msra.mxu0 0.0
    %364 = vmatprep.subr.mxu0 0.0
    %365 = vmatpush1.msra.mxu0 0.0
    %366 = vmatprep.subr.mxu0 0.0
    %367 = vmatpush1.msra.mxu0 0.0
    %368 = vmatprep.subr.mxu0 0.0
    %369 = vmatpush1.msra.mxu0 0.0
    %370 = vmatprep.subr.mxu0 0.0
    %371 = vmatpush1.msra.mxu0 0.0
    %372 = vmatprep.subr.mxu0 0.0
    %373 = vmatpush1.msra.mxu0 0.0
    %374 = vmatprep.subr.mxu0 0.0
    %375 = vmatpush1.msra.mxu0 0.0
    %376 = vmatprep.subr.mxu0 0.0
    %377 = vmatpush1.msra.mxu0 0.0
    %378 = vmatprep.subr.mxu0 0.0
    %379 = vmatpush1.msra.mxu0 0.0
    %380 = vmatprep.subr.mxu0 0.0
    %381 = vmatpush1.msra.mxu0 0.0
    %382 = vmatprep.subr.mxu0 0.0
    %383 = vmatpush1.msra.mxu0 0.0
    %384 = vmatprep.mubr.f32.mxu0 0.0
    %385 = vmatmul.mubr.f32.gmra.mrb[0].mxu0 %v291
    %v386 = vpop.f32.mrb[0].mxu0
    %v387 = vadd.f32 %v318, %v386
    %v388 = vpop.f32.mrb[0].mxu0
    %389 = vmatprep.mubr.f32.mxu0 0.0
    %390 = vmatmul.mubr.f32.gmra.mrb[0].mxu0 %v292
    %v391 = vpop.f32.mrb[0].mxu0
    %v392 = vadd.f32 %v318, %v391
    %v393 = vpop.f32.mrb[0].mxu0
    %394 = vmatprep.mubr.f32.mxu0 0.0
    %395 = vmatmul.mubr.f32.gmra.mrb[0].mxu0 %v293
    %v396 = vpop.f32.mrb[0].mxu0
    %v397 = vadd.f32 %v318, %v396
    %v398 = vpop.f32.mrb[0].mxu0
    %399 = vmatprep.mubr.f32.mxu0 0.0
    %400 = vmatmul.mubr.f32.gmra.mrb[0].mxu0 %v294
    %v401 = vpop.f32.mrb[0].mxu0
    %v402 = vadd.f32 %v318, %v401
    %v403 = vpop.f32.mrb[0].mxu0
    %404 = vdwg.mxu0
    %vm405 = vcmp.gt.f32.partialorder %v387, 0.0
    %vm406 = vcmp.gt.f32.partialorder %v392, 0.0
    %vm407 = vcmp.gt.f32.partialorder %v397, 0.0
    %vm408 = vcmp.gt.f32.partialorder %v402, 0.0
    %v409 = vmul.f32 %v387, 0.01
    %v410 = vmul.f32 %v392, 0.01
    %v411 = vmul.f32 %v397, 0.01
    %v412 = vmul.f32 %v402, 0.01
    %v413 = vsel %vm405, %v387, %v409
    %v414 = vsel %vm406, %v392, %v410
    %v415 = vsel %vm407, %v397, %v411
    %v416 = vsel %vm408, %v402, %v412
    %s417 = scalar_lea.vmem [#allocation2], 384
    %v418 = vld [vmem:[%s417] sm:$0xff]
    %v419 = vld [vmem:[%s417 + $0x8] sm:$0xff]
    %v420 = vld [vmem:[%s417 + $0x10] sm:$0xff]
    %v421 = vld [vmem:[%s417 + $0x18] sm:$0xff]
    %v422 = vld [vmem:[%s417 + $0x20] sm:$0xff]
    %v423 = vld [vmem:[%s417 + $0x28] sm:$0xff]
    %v424 = vld [vmem:[%s417 + $0x30] sm:$0xff]
    %v425 = vld [vmem:[%s417 + $0x38] sm:$0xff]
    %v426 = vld [vmem:[%s417 + $0x40] sm:$0xff]
    %v427 = vld [vmem:[%s417 + $0x48] sm:$0xff]
    %v428 = vld [vmem:[%s417 + $0x50] sm:$0xff]
    %v429 = vld [vmem:[%s417 + $0x58] sm:$0xff]
    %v430 = vld [vmem:[%s417 + $0x60] sm:$0xff]
    %v431 = vld [vmem:[%s417 + $0x68] sm:$0xff]
    %v432 = vld [vmem:[%s417 + $0x70] sm:$0xff]
    %v433 = vld [vmem:[%s417 + $0x78] sm:$0xff]
    %s434 = scalar_lea.vmem %s5, 3
    %v435 = vld [vmem:[%s434] sm:$0x1]
    %v437 = vlaneseq
    %v438 = vshrl.u32 %v437, 7
    %v439 = vsub.s32 0, %v438
    %v440 = vrot.slane %v435, %v439
    %442 = vmatprep.subr.mxu0 0.0
    %443 = vmatpush1.msra.mxu0 %v418
    %444 = vmatprep.subr.mxu0 0.0
    %445 = vmatpush1.msra.mxu0 %v419
    %446 = vmatprep.subr.mxu0 0.0
    %447 = vmatpush1.msra.mxu0 %v420
    %448 = vmatprep.subr.mxu0 0.0
    %449 = vmatpush1.msra.mxu0 %v421
    %450 = vmatprep.subr.mxu0 0.0
    %451 = vmatpush1.msra.mxu0 %v422
    %452 = vmatprep.subr.mxu0 0.0
    %453 = vmatpush1.msra.mxu0 %v423
    %454 = vmatprep.subr.mxu0 0.0
    %455 = vmatpush1.msra.mxu0 %v424
    %456 = vmatprep.subr.mxu0 0.0
    %457 = vmatpush1.msra.mxu0 %v425
    %458 = vmatprep.subr.mxu0 0.0
    %459 = vmatpush1.msra.mxu0 %v426
    %460 = vmatprep.subr.mxu0 0.0
    %461 = vmatpush1.msra.mxu0 %v427
    %462 = vmatprep.subr.mxu0 0.0
    %463 = vmatpush1.msra.mxu0 %v428
    %464 = vmatprep.subr.mxu0 0.0
    %465 = vmatpush1.msra.mxu0 %v429
    %466 = vmatprep.subr.mxu0 0.0
    %467 = vmatpush1.msra.mxu0 %v430
    %468 = vmatprep.subr.mxu0 0.0
    %469 = vmatpush1.msra.mxu0 %v431
    %470 = vmatprep.subr.mxu0 0.0
    %471 = vmatpush1.msra.mxu0 %v432
    %472 = vmatprep.subr.mxu0 0.0
    %473 = vmatpush1.msra.mxu0 %v433
    %474 = vmatprep.subr.mxu0 0.0
    %475 = vmatpush1.msra.mxu0 0.0
    %476 = vmatprep.subr.mxu0 0.0
    %477 = vmatpush1.msra.mxu0 0.0
    %478 = vmatprep.subr.mxu0 0.0
    %479 = vmatpush1.msra.mxu0 0.0
    %480 = vmatprep.subr.mxu0 0.0
    %481 = vmatpush1.msra.mxu0 0.0
    %482 = vmatprep.subr.mxu0 0.0
    %483 = vmatpush1.msra.mxu0 0.0
    %484 = vmatprep.subr.mxu0 0.0
    %485 = vmatpush1.msra.mxu0 0.0
    %486 = vmatprep.subr.mxu0 0.0
    %487 = vmatpush1.msra.mxu0 0.0
    %488 = vmatprep.subr.mxu0 0.0
    %489 = vmatpush1.msra.mxu0 0.0
    %490 = vmatprep.subr.mxu0 0.0
    %491 = vmatpush1.msra.mxu0 0.0
    %492 = vmatprep.subr.mxu0 0.0
    %493 = vmatpush1.msra.mxu0 0.0
    %494 = vmatprep.subr.mxu0 0.0
    %495 = vmatpush1.msra.mxu0 0.0
    %496 = vmatprep.subr.mxu0 0.0
    %497 = vmatpush1.msra.mxu0 0.0
    %498 = vmatprep.subr.mxu0 0.0
    %499 = vmatpush1.msra.mxu0 0.0
    %500 = vmatprep.subr.mxu0 0.0
    %501 = vmatpush1.msra.mxu0 0.0
    %502 = vmatprep.subr.mxu0 0.0
    %503 = vmatpush1.msra.mxu0 0.0
    %504 = vmatprep.subr.mxu0 0.0
    %505 = vmatpush1.msra.mxu0 0.0
    %506 = vmatprep.mubr.f32.mxu0 0.0
    %507 = vmatmul.mubr.f32.gmra.mrb[0].mxu0 %v413
    %v508 = vpop.f32.mrb[0].mxu0
    %v509 = vadd.f32 %v440, %v508
    %v510 = vpop.f32.mrb[0].mxu0
    %511 = vmatprep.mubr.f32.mxu0 0.0
    %512 = vmatmul.mubr.f32.gmra.mrb[0].mxu0 %v414
    %v513 = vpop.f32.mrb[0].mxu0
    %v514 = vadd.f32 %v440, %v513
    %v515 = vpop.f32.mrb[0].mxu0
    %516 = vmatprep.mubr.f32.mxu0 0.0
    %517 = vmatmul.mubr.f32.gmra.mrb[0].mxu0 %v415
    %v518 = vpop.f32.mrb[0].mxu0
    %v519 = vadd.f32 %v440, %v518
    %v520 = vpop.f32.mrb[0].mxu0
    %521 = vmatprep.mubr.f32.mxu0 0.0
    %522 = vmatmul.mubr.f32.gmra.mrb[0].mxu0 %v416
    %v523 = vpop.f32.mrb[0].mxu0
    %v524 = vadd.f32 %v440, %v523
    %v525 = vpop.f32.mrb[0].mxu0
    %526 = vdwg.mxu0
    %vm527 = vcmp.gt.f32.partialorder %v509, 0.0
    %vm528 = vcmp.gt.f32.partialorder %v514, 0.0
    %vm529 = vcmp.gt.f32.partialorder %v519, 0.0
    %vm530 = vcmp.gt.f32.partialorder %v524, 0.0
    %v531 = vmul.f32 %v509, 0.01
    %v532 = vmul.f32 %v514, 0.01
    %v533 = vmul.f32 %v519, 0.01
    %v534 = vmul.f32 %v524, 0.01
    %v535 = vsel %vm527, %v509, %v531
    %v536 = vsel %vm528, %v514, %v532
    %v537 = vsel %vm529, %v519, %v533
    %v538 = vsel %vm530, %v524, %v534
    %vm539 = vcmask 261120
    %v541 = vsel %vm539, %v43, 0
    %v544 = vsel %vm539, %v44, 0
    %546 = vmatprep.subr.mxu0 0.0
    %547 = vmatpush1.msra.mxu0 %v535
    %548 = vmatprep.subr.mxu0 0.0
    %549 = vmatpush1.msra.mxu0 %v536
    %550 = vmatprep.subr.mxu0 0.0
    %551 = vmatpush1.msra.mxu0 %v537
    %552 = vmatprep.subr.mxu0 0.0
    %553 = vmatpush1.msra.mxu0 %v538
    %554 = vmatprep.subr.mxu0 0.0
    %555 = vmatpush1.msra.mxu0 0.0
    %556 = vmatprep.subr.mxu0 0.0
    %557 = vmatpush1.msra.mxu0 0.0
    %558 = vmatprep.subr.mxu0 0.0
    %559 = vmatpush1.msra.mxu0 0.0
    %560 = vmatprep.subr.mxu0 0.0
    %561 = vmatpush1.msra.mxu0 0.0
    %562 = vmatprep.subr.mxu0 0.0
    %563 = vmatpush1.msra.mxu0 0.0
    %564 = vmatprep.subr.mxu0 0.0
    %565 = vmatpush1.msra.mxu0 0.0
    %566 = vmatprep.subr.mxu0 0.0
    %567 = vmatpush1.msra.mxu0 0.0
    %568 = vmatprep.subr.mxu0 0.0
    %569 = vmatpush1.msra.mxu0 0.0
    %570 = vmatprep.subr.mxu0 0.0
    %571 = vmatpush1.msra.mxu0 0.0
    %572 = vmatprep.subr.mxu0 0.0
    %573 = vmatpush1.msra.mxu0 0.0
    %574 = vmatprep.subr.mxu0 0.0
    %575 = vmatpush1.msra.mxu0 0.0
    %576 = vmatprep.subr.mxu0 0.0
    %577 = vmatpush1.msra.mxu0 0.0
    %578 = vmatprep.subr.mxu0 0.0
    %579 = vmatpush1.msra.mxu0 0.0
    %580 = vmatprep.subr.mxu0 0.0
    %581 = vmatpush1.msra.mxu0 0.0
    %582 = vmatprep.subr.mxu0 0.0
    %583 = vmatpush1.msra.mxu0 0.0
    %584 = vmatprep.subr.mxu0 0.0
    %585 = vmatpush1.msra.mxu0 0.0
    %586 = vmatprep.subr.mxu0 0.0
    %587 = vmatpush1.msra.mxu0 0.0
    %588 = vmatprep.subr.mxu0 0.0
    %589 = vmatpush1.msra.mxu0 0.0
    %590 = vmatprep.subr.mxu0 0.0
    %591 = vmatpush1.msra.mxu0 0.0
    %592 = vmatprep.subr.mxu0 0.0
    %593 = vmatpush1.msra.mxu0 0.0
    %594 = vmatprep.subr.mxu0 0.0
    %595 = vmatpush1.msra.mxu0 0.0
    %596 = vmatprep.subr.mxu0 0.0
    %597 = vmatpush1.msra.mxu0 0.0
    %598 = vmatprep.subr.mxu0 0.0
    %599 = vmatpush1.msra.mxu0 0.0
    %600 = vmatprep.subr.mxu0 0.0
    %601 = vmatpush1.msra.mxu0 0.0
    %602 = vmatprep.subr.mxu0 0.0
    %603 = vmatpush1.msra.mxu0 0.0
    %604 = vmatprep.subr.mxu0 0.0
    %605 = vmatpush1.msra.mxu0 0.0
    %606 = vmatprep.subr.mxu0 0.0
    %607 = vmatpush1.msra.mxu0 0.0
    %608 = vmatprep.subr.mxu0 0.0
    %609 = vmatpush1.msra.mxu0 0.0
    %610 = vmatprep.mubr.f32.mxu0 0.0
    %611 = vmatmul.mubr.f32.gmra.mrb[0].mxu0 %v541
    %v612 = vpop.f32.mrb[0].mxu0
    %v613 = vadd.f32 0.0, %v612
    %v614 = vpop.f32.mrb[0].mxu0
    %615 = vmatprep.mubr.f32.mxu0 0.0
    %616 = vmatmul.mubr.f32.gmra.mrb[0].mxu0 %v544
    %v617 = vpop.f32.mrb[0].mxu0
    %v618 = vadd.f32 0.0, %v617
    %v619 = vpop.f32.mrb[0].mxu0
    %620 = vdwg.mxu0
    %s621 = scalar_lea.vmem [#allocation2], 512
    %v622 = vld [vmem:[%s621] sm:$0xff]
    %v623 = vld [vmem:[%s621 + $0x8] sm:$0xff]
    %v624 = vld [vmem:[%s621 + $0x10] sm:$0xff]
    %v625 = vld [vmem:[%s621 + $0x18] sm:$0xff]
    %v626 = vld [vmem:[%s621 + $0x20] sm:$0xff]
    %v627 = vld [vmem:[%s621 + $0x28] sm:$0xff]
    %v628 = vld [vmem:[%s621 + $0x30] sm:$0xff]
    %v629 = vld [vmem:[%s621 + $0x38] sm:$0xff]
    %v630 = vld [vmem:[%s621 + $0x40] sm:$0xff]
    %v631 = vld [vmem:[%s621 + $0x48] sm:$0xff]
    %v632 = vld [vmem:[%s621 + $0x50] sm:$0xff]
    %v633 = vld [vmem:[%s621 + $0x58] sm:$0xff]
    %v634 = vld [vmem:[%s621 + $0x60] sm:$0xff]
    %v635 = vld [vmem:[%s621 + $0x68] sm:$0xff]
    %v636 = vld [vmem:[%s621 + $0x70] sm:$0xff]
    %v637 = vld [vmem:[%s621 + $0x78] sm:$0xff]
    %s638 = scalar_lea.vmem %s5, 4
    %v639 = vld [vmem:[%s638] sm:$0x1]
    %v641 = vlaneseq
    %v642 = vshrl.u32 %v641, 7
    %v643 = vsub.s32 0, %v642
    %v644 = vrot.slane %v639, %v643
    %646 = vmatprep.subr.mxu0 0.0
    %647 = vmatpush1.msra.mxu0 %v622
    %648 = vmatprep.subr.mxu0 0.0
    %649 = vmatpush1.msra.mxu0 %v623
    %650 = vmatprep.subr.mxu0 0.0
    %651 = vmatpush1.msra.mxu0 %v624
    %652 = vmatprep.subr.mxu0 0.0
    %653 = vmatpush1.msra.mxu0 %v625
    %654 = vmatprep.subr.mxu0 0.0
    %655 = vmatpush1.msra.mxu0 %v626
    %656 = vmatprep.subr.mxu0 0.0
    %657 = vmatpush1.msra.mxu0 %v627
    %658 = vmatprep.subr.mxu0 0.0
    %659 = vmatpush1.msra.mxu0 %v628
    %660 = vmatprep.subr.mxu0 0.0
    %661 = vmatpush1.msra.mxu0 %v629
    %662 = vmatprep.subr.mxu0 0.0
    %663 = vmatpush1.msra.mxu0 %v630
    %664 = vmatprep.subr.mxu0 0.0
    %665 = vmatpush1.msra.mxu0 %v631
    %666 = vmatprep.subr.mxu0 0.0
    %667 = vmatpush1.msra.mxu0 %v632
    %668 = vmatprep.subr.mxu0 0.0
    %669 = vmatpush1.msra.mxu0 %v633
    %670 = vmatprep.subr.mxu0 0.0
    %671 = vmatpush1.msra.mxu0 %v634
    %672 = vmatprep.subr.mxu0 0.0
    %673 = vmatpush1.msra.mxu0 %v635
    %674 = vmatprep.subr.mxu0 0.0
    %675 = vmatpush1.msra.mxu0 %v636
    %676 = vmatprep.subr.mxu0 0.0
    %677 = vmatpush1.msra.mxu0 %v637
    %678 = vmatprep.subr.mxu0 0.0
    %679 = vmatpush1.msra.mxu0 0.0
    %680 = vmatprep.subr.mxu0 0.0
    %681 = vmatpush1.msra.mxu0 0.0
    %682 = vmatprep.subr.mxu0 0.0
    %683 = vmatpush1.msra.mxu0 0.0
    %684 = vmatprep.subr.mxu0 0.0
    %685 = vmatpush1.msra.mxu0 0.0
    %686 = vmatprep.subr.mxu0 0.0
    %687 = vmatpush1.msra.mxu0 0.0
    %688 = vmatprep.subr.mxu0 0.0
    %689 = vmatpush1.msra.mxu0 0.0
    %690 = vmatprep.subr.mxu0 0.0
    %691 = vmatpush1.msra.mxu0 0.0
    %692 = vmatprep.subr.mxu0 0.0
    %693 = vmatpush1.msra.mxu0 0.0
    %694 = vmatprep.subr.mxu0 0.0
    %695 = vmatpush1.msra.mxu0 0.0
    %696 = vmatprep.subr.mxu0 0.0
    %697 = vmatpush1.msra.mxu0 0.0
    %698 = vmatprep.subr.mxu0 0.0
    %699 = vmatpush1.msra.mxu0 0.0
    %700 = vmatprep.subr.mxu0 0.0
    %701 = vmatpush1.msra.mxu0 0.0
    %702 = vmatprep.subr.mxu0 0.0
    %703 = vmatpush1.msra.mxu0 0.0
    %704 = vmatprep.subr.mxu0 0.0
    %705 = vmatpush1.msra.mxu0 0.0
    %706 = vmatprep.subr.mxu0 0.0
    %707 = vmatpush1.msra.mxu0 0.0
    %708 = vmatprep.subr.mxu0 0.0
    %709 = vmatpush1.msra.mxu0 0.0
    %710 = vmatprep.mubr.f32.mxu0 0.0
    %711 = vmatmul.mubr.f32.gmra.mrb[0].mxu0 %v613
    %v712 = vpop.f32.mrb[0].mxu0
    %v713 = vadd.f32 %v644, %v712
    %v714 = vpop.f32.mrb[0].mxu0
    %715 = vmatprep.mubr.f32.mxu0 0.0
    %716 = vmatmul.mubr.f32.gmra.mrb[0].mxu0 %v618
    %v717 = vpop.f32.mrb[0].mxu0
    %v718 = vadd.f32 %v644, %v717
    %v719 = vpop.f32.mrb[0].mxu0
    %720 = vdwg.mxu0
    %vm721 = vcmp.gt.f32.partialorder %v713, 0.0
    %vm722 = vcmp.gt.f32.partialorder %v718, 0.0
    %v723 = vmul.f32 %v713, 0.01
    %v724 = vmul.f32 %v718, 0.01
    %v725 = vsel %vm721, %v713, %v723
    %v726 = vsel %vm722, %v718, %v724
    %s727 = scalar_lea.vmem [#allocation2], 640
    %v728 = vld [vmem:[%s727] sm:$0xff]
    %v729 = vld [vmem:[%s727 + $0x8] sm:$0xff]
    %v730 = vld [vmem:[%s727 + $0x10] sm:$0xff]
    %v731 = vld [vmem:[%s727 + $0x18] sm:$0xff]
    %v732 = vld [vmem:[%s727 + $0x20] sm:$0xff]
    %v733 = vld [vmem:[%s727 + $0x28] sm:$0xff]
    %v734 = vld [vmem:[%s727 + $0x30] sm:$0xff]
    %v735 = vld [vmem:[%s727 + $0x38] sm:$0xff]
    %v736 = vld [vmem:[%s727 + $0x40] sm:$0xff]
    %v737 = vld [vmem:[%s727 + $0x48] sm:$0xff]
    %v738 = vld [vmem:[%s727 + $0x50] sm:$0xff]
    %v739 = vld [vmem:[%s727 + $0x58] sm:$0xff]
    %v740 = vld [vmem:[%s727 + $0x60] sm:$0xff]
    %v741 = vld [vmem:[%s727 + $0x68] sm:$0xff]
    %v742 = vld [vmem:[%s727 + $0x70] sm:$0xff]
    %v743 = vld [vmem:[%s727 + $0x78] sm:$0xff]
    %s744 = scalar_lea.vmem %s5, 5
    %v745 = vld [vmem:[%s744] sm:$0x1]
    %v747 = vlaneseq
    %v748 = vshrl.u32 %v747, 7
    %v749 = vsub.s32 0, %v748
    %v750 = vrot.slane %v745, %v749
    %752 = vmatprep.subr.mxu0 0.0
    %753 = vmatpush1.msra.mxu0 %v728
    %754 = vmatprep.subr.mxu0 0.0
    %755 = vmatpush1.msra.mxu0 %v729
    %756 = vmatprep.subr.mxu0 0.0
    %757 = vmatpush1.msra.mxu0 %v730
    %758 = vmatprep.subr.mxu0 0.0
    %759 = vmatpush1.msra.mxu0 %v731
    %760 = vmatprep.subr.mxu0 0.0
    %761 = vmatpush1.msra.mxu0 %v732
    %762 = vmatprep.subr.mxu0 0.0
    %763 = vmatpush1.msra.mxu0 %v733
    %764 = vmatprep.subr.mxu0 0.0
    %765 = vmatpush1.msra.mxu0 %v734
    %766 = vmatprep.subr.mxu0 0.0
    %767 = vmatpush1.msra.mxu0 %v735
    %768 = vmatprep.subr.mxu0 0.0
    %769 = vmatpush1.msra.mxu0 %v736
    %770 = vmatprep.subr.mxu0 0.0
    %771 = vmatpush1.msra.mxu0 %v737
    %772 = vmatprep.subr.mxu0 0.0
    %773 = vmatpush1.msra.mxu0 %v738
    %774 = vmatprep.subr.mxu0 0.0
    %775 = vmatpush1.msra.mxu0 %v739
    %776 = vmatprep.subr.mxu0 0.0
    %777 = vmatpush1.msra.mxu0 %v740
    %778 = vmatprep.subr.mxu0 0.0
    %779 = vmatpush1.msra.mxu0 %v741
    %780 = vmatprep.subr.mxu0 0.0
    %781 = vmatpush1.msra.mxu0 %v742
    %782 = vmatprep.subr.mxu0 0.0
    %783 = vmatpush1.msra.mxu0 %v743
    %784 = vmatprep.subr.mxu0 0.0
    %785 = vmatpush1.msra.mxu0 0.0
    %786 = vmatprep.subr.mxu0 0.0
    %787 = vmatpush1.msra.mxu0 0.0
    %788 = vmatprep.subr.mxu0 0.0
    %789 = vmatpush1.msra.mxu0 0.0
    %790 = vmatprep.subr.mxu0 0.0
    %791 = vmatpush1.msra.mxu0 0.0
    %792 = vmatprep.subr.mxu0 0.0
    %793 = vmatpush1.msra.mxu0 0.0
    %794 = vmatprep.subr.mxu0 0.0
    %795 = vmatpush1.msra.mxu0 0.0
    %796 = vmatprep.subr.mxu0 0.0
    %797 = vmatpush1.msra.mxu0 0.0
    %798 = vmatprep.subr.mxu0 0.0
    %799 = vmatpush1.msra.mxu0 0.0
    %800 = vmatprep.subr.mxu0 0.0
    %801 = vmatpush1.msra.mxu0 0.0
    %802 = vmatprep.subr.mxu0 0.0
    %803 = vmatpush1.msra.mxu0 0.0
    %804 = vmatprep.subr.mxu0 0.0
    %805 = vmatpush1.msra.mxu0 0.0
    %806 = vmatprep.subr.mxu0 0.0
    %807 = vmatpush1.msra.mxu0 0.0
    %808 = vmatprep.subr.mxu0 0.0
    %809 = vmatpush1.msra.mxu0 0.0
    %810 = vmatprep.subr.mxu0 0.0
    %811 = vmatpush1.msra.mxu0 0.0
    %812 = vmatprep.subr.mxu0 0.0
    %813 = vmatpush1.msra.mxu0 0.0
    %814 = vmatprep.subr.mxu0 0.0
    %815 = vmatpush1.msra.mxu0 0.0
    %816 = vmatprep.mubr.f32.mxu0 0.0
    %817 = vmatmul.mubr.f32.gmra.mrb[0].mxu0 %v725
    %v818 = vpop.f32.mrb[0].mxu0
    %v819 = vadd.f32 %v750, %v818
    %v820 = vpop.f32.mrb[0].mxu0
    %821 = vmatprep.mubr.f32.mxu0 0.0
    %822 = vmatmul.mubr.f32.gmra.mrb[0].mxu0 %v726
    %v823 = vpop.f32.mrb[0].mxu0
    %v824 = vadd.f32 %v750, %v823
    %v825 = vpop.f32.mrb[0].mxu0
    %826 = vdwg.mxu0
    %vm827 = vcmp.gt.f32.partialorder %v819, 0.0
    %vm828 = vcmp.gt.f32.partialorder %v824, 0.0
    %v829 = vmul.f32 %v819, 0.01
    %v830 = vmul.f32 %v824, 0.01
    %v831 = vsel %vm827, %v819, %v829
    %v832 = vsel %vm828, %v824, %v830
    %s833 = scalar_lea.vmem [#allocation2], 768
    %v834 = vld [vmem:[%s833] sm:$0xff]
    %v835 = vld [vmem:[%s833 + $0x8] sm:$0xff]
    %v836 = vld [vmem:[%s833 + $0x10] sm:$0xff]
    %v837 = vld [vmem:[%s833 + $0x18] sm:$0xff]
    %v838 = vld [vmem:[%s833 + $0x20] sm:$0xff]
    %v839 = vld [vmem:[%s833 + $0x28] sm:$0xff]
    %v840 = vld [vmem:[%s833 + $0x30] sm:$0xff]
    %v841 = vld [vmem:[%s833 + $0x38] sm:$0xff]
    %v842 = vld [vmem:[%s833 + $0x40] sm:$0xff]
    %v843 = vld [vmem:[%s833 + $0x48] sm:$0xff]
    %v844 = vld [vmem:[%s833 + $0x50] sm:$0xff]
    %v845 = vld [vmem:[%s833 + $0x58] sm:$0xff]
    %v846 = vld [vmem:[%s833 + $0x60] sm:$0xff]
    %v847 = vld [vmem:[%s833 + $0x68] sm:$0xff]
    %v848 = vld [vmem:[%s833 + $0x70] sm:$0xff]
    %v849 = vld [vmem:[%s833 + $0x78] sm:$0xff]
    %s850 = scalar_lea.vmem %s5, 6
    %v851 = vld [vmem:[%s850] sm:$0x1]
    %v853 = vlaneseq
    %v854 = vshrl.u32 %v853, 7
    %v855 = vsub.s32 0, %v854
    %v856 = vrot.slane %v851, %v855
    %858 = vmatprep.subr.mxu0 0.0
    %859 = vmatpush1.msra.mxu0 %v834
    %860 = vmatprep.subr.mxu0 0.0
    %861 = vmatpush1.msra.mxu0 %v835
    %862 = vmatprep.subr.mxu0 0.0
    %863 = vmatpush1.msra.mxu0 %v836
    %864 = vmatprep.subr.mxu0 0.0
    %865 = vmatpush1.msra.mxu0 %v837
    %866 = vmatprep.subr.mxu0 0.0
    %867 = vmatpush1.msra.mxu0 %v838
    %868 = vmatprep.subr.mxu0 0.0
    %869 = vmatpush1.msra.mxu0 %v839
    %870 = vmatprep.subr.mxu0 0.0
    %871 = vmatpush1.msra.mxu0 %v840
    %872 = vmatprep.subr.mxu0 0.0
    %873 = vmatpush1.msra.mxu0 %v841
    %874 = vmatprep.subr.mxu0 0.0
    %875 = vmatpush1.msra.mxu0 %v842
    %876 = vmatprep.subr.mxu0 0.0
    %877 = vmatpush1.msra.mxu0 %v843
    %878 = vmatprep.subr.mxu0 0.0
    %879 = vmatpush1.msra.mxu0 %v844
    %880 = vmatprep.subr.mxu0 0.0
    %881 = vmatpush1.msra.mxu0 %v845
    %882 = vmatprep.subr.mxu0 0.0
    %883 = vmatpush1.msra.mxu0 %v846
    %884 = vmatprep.subr.mxu0 0.0
    %885 = vmatpush1.msra.mxu0 %v847
    %886 = vmatprep.subr.mxu0 0.0
    %887 = vmatpush1.msra.mxu0 %v848
    %888 = vmatprep.subr.mxu0 0.0
    %889 = vmatpush1.msra.mxu0 %v849
    %890 = vmatprep.subr.mxu0 0.0
    %891 = vmatpush1.msra.mxu0 0.0
    %892 = vmatprep.subr.mxu0 0.0
    %893 = vmatpush1.msra.mxu0 0.0
    %894 = vmatprep.subr.mxu0 0.0
    %895 = vmatpush1.msra.mxu0 0.0
    %896 = vmatprep.subr.mxu0 0.0
    %897 = vmatpush1.msra.mxu0 0.0
    %898 = vmatprep.subr.mxu0 0.0
    %899 = vmatpush1.msra.mxu0 0.0
    %900 = vmatprep.subr.mxu0 0.0
    %901 = vmatpush1.msra.mxu0 0.0
    %902 = vmatprep.subr.mxu0 0.0
    %903 = vmatpush1.msra.mxu0 0.0
    %904 = vmatprep.subr.mxu0 0.0
    %905 = vmatpush1.msra.mxu0 0.0
    %906 = vmatprep.subr.mxu0 0.0
    %907 = vmatpush1.msra.mxu0 0.0
    %908 = vmatprep.subr.mxu0 0.0
    %909 = vmatpush1.msra.mxu0 0.0
    %910 = vmatprep.subr.mxu0 0.0
    %911 = vmatpush1.msra.mxu0 0.0
    %912 = vmatprep.subr.mxu0 0.0
    %913 = vmatpush1.msra.mxu0 0.0
    %914 = vmatprep.subr.mxu0 0.0
    %915 = vmatpush1.msra.mxu0 0.0
    %916 = vmatprep.subr.mxu0 0.0
    %917 = vmatpush1.msra.mxu0 0.0
    %918 = vmatprep.subr.mxu0 0.0
    %919 = vmatpush1.msra.mxu0 0.0
    %920 = vmatprep.subr.mxu0 0.0
    %921 = vmatpush1.msra.mxu0 0.0
    %922 = vmatprep.mubr.f32.mxu0 0.0
    %923 = vmatmul.mubr.f32.gmra.mrb[0].mxu0 %v831
    %v924 = vpop.f32.mrb[0].mxu0
    %v925 = vadd.f32 %v856, %v924
    %v926 = vpop.f32.mrb[0].mxu0
    %927 = vmatprep.mubr.f32.mxu0 0.0
    %928 = vmatmul.mubr.f32.gmra.mrb[0].mxu0 %v832
    %v929 = vpop.f32.mrb[0].mxu0
    %v930 = vadd.f32 %v856, %v929
    %v931 = vpop.f32.mrb[0].mxu0
    %932 = vdwg.mxu0
    %vm933 = vcmp.gt.f32.partialorder %v925, 0.0
    %vm934 = vcmp.gt.f32.partialorder %v930, 0.0
    %v935 = vmul.f32 %v925, 0.01
    %v936 = vmul.f32 %v930, 0.01
    %v937 = vsel %vm933, %v925, %v935
    %v938 = vsel %vm934, %v930, %v936
    %s939 = scalar_lea.vmem [#allocation2], 896
    %v940 = vld [vmem:[%s939] sm:$0xff]
    %v941 = vld [vmem:[%s939 + $0x8] sm:$0xff]
    %v942 = vld [vmem:[%s939 + $0x10] sm:$0xff]
    %v943 = vld [vmem:[%s939 + $0x18] sm:$0xff]
    %v944 = vld [vmem:[%s939 + $0x20] sm:$0xff]
    %v945 = vld [vmem:[%s939 + $0x28] sm:$0xff]
    %v946 = vld [vmem:[%s939 + $0x30] sm:$0xff]
    %v947 = vld [vmem:[%s939 + $0x38] sm:$0xff]
    %v948 = vld [vmem:[%s939 + $0x40] sm:$0xff]
    %v949 = vld [vmem:[%s939 + $0x48] sm:$0xff]
    %v950 = vld [vmem:[%s939 + $0x50] sm:$0xff]
    %v951 = vld [vmem:[%s939 + $0x58] sm:$0xff]
    %v952 = vld [vmem:[%s939 + $0x60] sm:$0xff]
    %v953 = vld [vmem:[%s939 + $0x68] sm:$0xff]
    %v954 = vld [vmem:[%s939 + $0x70] sm:$0xff]
    %v955 = vld [vmem:[%s939 + $0x78] sm:$0xff]
    %s956 = scalar_lea.vmem %s5, 7
    %v957 = vld [vmem:[%s956] sm:$0x1]
    %v959 = vlaneseq
    %v960 = vshrl.u32 %v959, 7
    %v961 = vsub.s32 0, %v960
    %v962 = vrot.slane %v957, %v961
    %964 = vmatprep.subr.mxu0 0.0
    %965 = vmatpush1.msra.mxu0 %v940
    %966 = vmatprep.subr.mxu0 0.0
    %967 = vmatpush1.msra.mxu0 %v941
    %968 = vmatprep.subr.mxu0 0.0
    %969 = vmatpush1.msra.mxu0 %v942
    %970 = vmatprep.subr.mxu0 0.0
    %971 = vmatpush1.msra.mxu0 %v943
    %972 = vmatprep.subr.mxu0 0.0
    %973 = vmatpush1.msra.mxu0 %v944
    %974 = vmatprep.subr.mxu0 0.0
    %975 = vmatpush1.msra.mxu0 %v945
    %976 = vmatprep.subr.mxu0 0.0
    %977 = vmatpush1.msra.mxu0 %v946
    %978 = vmatprep.subr.mxu0 0.0
    %979 = vmatpush1.msra.mxu0 %v947
    %980 = vmatprep.subr.mxu0 0.0
    %981 = vmatpush1.msra.mxu0 %v948
    %982 = vmatprep.subr.mxu0 0.0
    %983 = vmatpush1.msra.mxu0 %v949
    %984 = vmatprep.subr.mxu0 0.0
    %985 = vmatpush1.msra.mxu0 %v950
    %986 = vmatprep.subr.mxu0 0.0
    %987 = vmatpush1.msra.mxu0 %v951
    %988 = vmatprep.subr.mxu0 0.0
    %989 = vmatpush1.msra.mxu0 %v952
    %990 = vmatprep.subr.mxu0 0.0
    %991 = vmatpush1.msra.mxu0 %v953
    %992 = vmatprep.subr.mxu0 0.0
    %993 = vmatpush1.msra.mxu0 %v954
    %994 = vmatprep.subr.mxu0 0.0
    %995 = vmatpush1.msra.mxu0 %v955
    %996 = vmatprep.subr.mxu0 0.0
    %997 = vmatpush1.msra.mxu0 0.0
    %998 = vmatprep.subr.mxu0 0.0
    %999 = vmatpush1.msra.mxu0 0.0
    %1000 = vmatprep.subr.mxu0 0.0
    %1001 = vmatpush1.msra.mxu0 0.0
    %1002 = vmatprep.subr.mxu0 0.0
    %1003 = vmatpush1.msra.mxu0 0.0
    %1004 = vmatprep.subr.mxu0 0.0
    %1005 = vmatpush1.msra.mxu0 0.0
    %1006 = vmatprep.subr.mxu0 0.0
    %1007 = vmatpush1.msra.mxu0 0.0
    %1008 = vmatprep.subr.mxu0 0.0
    %1009 = vmatpush1.msra.mxu0 0.0
    %1010 = vmatprep.subr.mxu0 0.0
    %1011 = vmatpush1.msra.mxu0 0.0
    %1012 = vmatprep.subr.mxu0 0.0
    %1013 = vmatpush1.msra.mxu0 0.0
    %1014 = vmatprep.subr.mxu0 0.0
    %1015 = vmatpush1.msra.mxu0 0.0
    %1016 = vmatprep.subr.mxu0 0.0
    %1017 = vmatpush1.msra.mxu0 0.0
    %1018 = vmatprep.subr.mxu0 0.0
    %1019 = vmatpush1.msra.mxu0 0.0
    %1020 = vmatprep.subr.mxu0 0.0
    %1021 = vmatpush1.msra.mxu0 0.0
    %1022 = vmatprep.subr.mxu0 0.0
    %1023 = vmatpush1.msra.mxu0 0.0
    %1024 = vmatprep.subr.mxu0 0.0
    %1025 = vmatpush1.msra.mxu0 0.0
    %1026 = vmatprep.subr.mxu0 0.0
    %1027 = vmatpush1.msra.mxu0 0.0
    %1028 = vmatprep.mubr.f32.mxu0 0.0
    %1029 = vmatmul.mubr.f32.gmra.mrb[0].mxu0 %v937
    %v1030 = vpop.f32.mrb[0].mxu0
    %v1031 = vadd.f32 %v962, %v1030
    %v1032 = vpop.f32.mrb[0].mxu0
    %1033 = vmatprep.mubr.f32.mxu0 0.0
    %1034 = vmatmul.mubr.f32.gmra.mrb[0].mxu0 %v938
    %v1035 = vpop.f32.mrb[0].mxu0
    %v1036 = vadd.f32 %v962, %v1035
    %v1037 = vpop.f32.mrb[0].mxu0
    %1038 = vdwg.mxu0
    %vm1039 = vcmp.gt.f32.partialorder %v1031, 0.0
    %vm1040 = vcmp.gt.f32.partialorder %v1036, 0.0
    %v1041 = vmul.f32 %v1031, 0.01
    %v1042 = vmul.f32 %v1036, 0.01
    %v1043 = vsel %vm1039, %v1031, %v1041
    %v1044 = vsel %vm1040, %v1036, %v1042
    %vm1045 = vcmask 130048
    %v1047 = vsel %vm1045, %v49, 0
    %v1050 = vsel %vm1045, %v50, 0
    %v1053 = vsel %vm1045, %v51, 0
    %v1056 = vsel %vm1045, %v52, 0
    %1058 = vmatprep.subr.mxu0 0.0
    %1059 = vmatpush1.msra.mxu0 %v1043
    %1060 = vmatprep.subr.mxu0 0.0
    %1061 = vmatpush1.msra.mxu0 %v1044
    %1062 = vmatprep.subr.mxu0 0.0
    %1063 = vmatpush1.msra.mxu0 0.0
    %1064 = vmatprep.subr.mxu0 0.0
    %1065 = vmatpush1.msra.mxu0 0.0
    %1066 = vmatprep.subr.mxu0 0.0
    %1067 = vmatpush1.msra.mxu0 0.0
    %1068 = vmatprep.subr.mxu0 0.0
    %1069 = vmatpush1.msra.mxu0 0.0
    %1070 = vmatprep.subr.mxu0 0.0
    %1071 = vmatpush1.msra.mxu0 0.0
    %1072 = vmatprep.subr.mxu0 0.0
    %1073 = vmatpush1.msra.mxu0 0.0
    %1074 = vmatprep.subr.mxu0 0.0
    %1075 = vmatpush1.msra.mxu0 0.0
    %1076 = vmatprep.subr.mxu0 0.0
    %1077 = vmatpush1.msra.mxu0 0.0
    %1078 = vmatprep.subr.mxu0 0.0
    %1079 = vmatpush1.msra.mxu0 0.0
    %1080 = vmatprep.subr.mxu0 0.0
    %1081 = vmatpush1.msra.mxu0 0.0
    %1082 = vmatprep.subr.mxu0 0.0
    %1083 = vmatpush1.msra.mxu0 0.0
    %1084 = vmatprep.subr.mxu0 0.0
    %1085 = vmatpush1.msra.mxu0 0.0
    %1086 = vmatprep.subr.mxu0 0.0
    %1087 = vmatpush1.msra.mxu0 0.0
    %1088 = vmatprep.subr.mxu0 0.0
    %1089 = vmatpush1.msra.mxu0 0.0
    %1090 = vmatprep.subr.mxu0 0.0
    %1091 = vmatpush1.msra.mxu0 0.0
    %1092 = vmatprep.subr.mxu0 0.0
    %1093 = vmatpush1.msra.mxu0 0.0
    %1094 = vmatprep.subr.mxu0 0.0
    %1095 = vmatpush1.msra.mxu0 0.0
    %1096 = vmatprep.subr.mxu0 0.0
    %1097 = vmatpush1.msra.mxu0 0.0
    %1098 = vmatprep.subr.mxu0 0.0
    %1099 = vmatpush1.msra.mxu0 0.0
    %1100 = vmatprep.subr.mxu0 0.0
    %1101 = vmatpush1.msra.mxu0 0.0
    %1102 = vmatprep.subr.mxu0 0.0
    %1103 = vmatpush1.msra.mxu0 0.0
    %1104 = vmatprep.subr.mxu0 0.0
    %1105 = vmatpush1.msra.mxu0 0.0
    %1106 = vmatprep.subr.mxu0 0.0
    %1107 = vmatpush1.msra.mxu0 0.0
    %1108 = vmatprep.subr.mxu0 0.0
    %1109 = vmatpush1.msra.mxu0 0.0
    %1110 = vmatprep.subr.mxu0 0.0
    %1111 = vmatpush1.msra.mxu0 0.0
    %1112 = vmatprep.subr.mxu0 0.0
    %1113 = vmatpush1.msra.mxu0 0.0
    %1114 = vmatprep.subr.mxu0 0.0
    %1115 = vmatpush1.msra.mxu0 0.0
    %1116 = vmatprep.subr.mxu0 0.0
    %1117 = vmatpush1.msra.mxu0 0.0
    %1118 = vmatprep.subr.mxu0 0.0
    %1119 = vmatpush1.msra.mxu0 0.0
    %1120 = vmatprep.subr.mxu0 0.0
    %1121 = vmatpush1.msra.mxu0 0.0
    %1122 = vmatprep.mubr.f32.mxu0 0.0
    %1123 = vmatmul.mubr.f32.gmra.mrb[0].mxu0 %v1047
    %v1124 = vpop.f32.mrb[0].mxu0
    %v1125 = vadd.f32 0.0, %v1124
    %v1126 = vpop.f32.mrb[0].mxu0
    %1127 = vmatprep.mubr.f32.mxu0 0.0
    %1128 = vmatmul.mubr.f32.gmra.mrb[0].mxu0 %v1050
    %v1129 = vpop.f32.mrb[0].mxu0
    %v1130 = vadd.f32 0.0, %v1129
    %v1131 = vpop.f32.mrb[0].mxu0
    %1132 = vmatprep.mubr.f32.mxu0 0.0
    %1133 = vmatmul.mubr.f32.gmra.mrb[0].mxu0 %v1053
    %v1134 = vpop.f32.mrb[0].mxu0
    %v1135 = vadd.f32 0.0, %v1134
    %v1136 = vpop.f32.mrb[0].mxu0
    %1137 = vmatprep.mubr.f32.mxu0 0.0
    %1138 = vmatmul.mubr.f32.gmra.mrb[0].mxu0 %v1056
    %v1139 = vpop.f32.mrb[0].mxu0
    %v1140 = vadd.f32 0.0, %v1139
    %v1141 = vpop.f32.mrb[0].mxu0
    %1142 = vdwg.mxu0
    %1143 = vmatprep.subr.mxu0 0.0
    %1144 = vmatpush1.msra.mxu0 %v53
    %1145 = vmatprep.subr.mxu0 0.0
    %1146 = vmatpush1.msra.mxu0 %v54
    %1147 = vmatprep.subr.mxu0 0.0
    %1148 = vmatpush1.msra.mxu0 %v55
    %1149 = vmatprep.subr.mxu0 0.0
    %1150 = vmatpush1.msra.mxu0 %v56
    %1151 = vmatprep.subr.mxu0 0.0
    %1152 = vmatpush1.msra.mxu0 %v57
    %1153 = vmatprep.subr.mxu0 0.0
    %1154 = vmatpush1.msra.mxu0 %v58
    %1155 = vmatprep.subr.mxu0 0.0
    %1156 = vmatpush1.msra.mxu0 %v59
    %1157 = vmatprep.subr.mxu0 0.0
    %1158 = vmatpush1.msra.mxu0 %v60
    %1159 = vmatprep.subr.mxu0 0.0
    %1160 = vmatpush1.msra.mxu0 %v61
    %1161 = vmatprep.subr.mxu0 0.0
    %1162 = vmatpush1.msra.mxu0 %v62
    %1163 = vmatprep.subr.mxu0 0.0
    %1164 = vmatpush1.msra.mxu0 %v63
    %1165 = vmatprep.subr.mxu0 0.0
    %1166 = vmatpush1.msra.mxu0 %v64
    %1167 = vmatprep.subr.mxu0 0.0
    %1168 = vmatpush1.msra.mxu0 %v65
    %1169 = vmatprep.subr.mxu0 0.0
    %1170 = vmatpush1.msra.mxu0 %v66
    %1171 = vmatprep.subr.mxu0 0.0
    %1172 = vmatpush1.msra.mxu0 %v67
    %1173 = vmatprep.subr.mxu0 0.0
    %1174 = vmatpush1.msra.mxu0 %v68
    %1175 = vmatprep.subr.mxu0 0.0
    %1176 = vmatpush1.msra.mxu0 0.0
    %1177 = vmatprep.subr.mxu0 0.0
    %1178 = vmatpush1.msra.mxu0 0.0
    %1179 = vmatprep.subr.mxu0 0.0
    %1180 = vmatpush1.msra.mxu0 0.0
    %1181 = vmatprep.subr.mxu0 0.0
    %1182 = vmatpush1.msra.mxu0 0.0
    %1183 = vmatprep.subr.mxu0 0.0
    %1184 = vmatpush1.msra.mxu0 0.0
    %1185 = vmatprep.subr.mxu0 0.0
    %1186 = vmatpush1.msra.mxu0 0.0
    %1187 = vmatprep.subr.mxu0 0.0
    %1188 = vmatpush1.msra.mxu0 0.0
    %1189 = vmatprep.subr.mxu0 0.0
    %1190 = vmatpush1.msra.mxu0 0.0
    %1191 = vmatprep.subr.mxu0 0.0
    %1192 = vmatpush1.msra.mxu0 0.0
    %1193 = vmatprep.subr.mxu0 0.0
    %1194 = vmatpush1.msra.mxu0 0.0
    %1195 = vmatprep.subr.mxu0 0.0
    %1196 = vmatpush1.msra.mxu0 0.0
    %1197 = vmatprep.subr.mxu0 0.0
    %1198 = vmatpush1.msra.mxu0 0.0
    %1199 = vmatprep.subr.mxu0 0.0
    %1200 = vmatpush1.msra.mxu0 0.0
    %1201 = vmatprep.subr.mxu0 0.0
    %1202 = vmatpush1.msra.mxu0 0.0
    %1203 = vmatprep.subr.mxu0 0.0
    %1204 = vmatpush1.msra.mxu0 0.0
    %1205 = vmatprep.subr.mxu0 0.0
    %1206 = vmatpush1.msra.mxu0 0.0
    %1207 = vmatprep.mubr.f32.mxu0 0.0
    %1208 = vmatmul.mubr.f32.gmra.mrb[0].mxu0 %v1125
    %v1209 = vpop.f32.mrb[0].mxu0
    %v1210 = vadd.f32 %v74, %v1209
    %v1211 = vpop.f32.mrb[0].mxu0
    %1212 = vmatprep.mubr.f32.mxu0 0.0
    %1213 = vmatmul.mubr.f32.gmra.mrb[0].mxu0 %v1130
    %v1214 = vpop.f32.mrb[0].mxu0
    %v1215 = vadd.f32 %v74, %v1214
    %v1216 = vpop.f32.mrb[0].mxu0
    %1217 = vmatprep.mubr.f32.mxu0 0.0
    %1218 = vmatmul.mubr.f32.gmra.mrb[0].mxu0 %v1135
    %v1219 = vpop.f32.mrb[0].mxu0
    %v1220 = vadd.f32 %v74, %v1219
    %v1221 = vpop.f32.mrb[0].mxu0
    %1222 = vmatprep.mubr.f32.mxu0 0.0
    %1223 = vmatmul.mubr.f32.gmra.mrb[0].mxu0 %v1140
    %v1224 = vpop.f32.mrb[0].mxu0
    %v1225 = vadd.f32 %v74, %v1224
    %v1226 = vpop.f32.mrb[0].mxu0
    %1227 = vdwg.mxu0
    %vm1228 = vcmp.gt.f32.partialorder %v1210, 0.0
    %vm1229 = vcmp.gt.f32.partialorder %v1215, 0.0
    %vm1230 = vcmp.gt.f32.partialorder %v1220, 0.0
    %vm1231 = vcmp.gt.f32.partialorder %v1225, 0.0
    %v1232 = vmul.f32 %v1210, 0.01
    %v1233 = vmul.f32 %v1215, 0.01
    %v1234 = vmul.f32 %v1220, 0.01
    %v1235 = vmul.f32 %v1225, 0.01
    %v1236 = vsel %vm1228, %v1210, %v1232
    %v1237 = vsel %vm1229, %v1215, %v1233
    %v1238 = vsel %vm1230, %v1220, %v1234
    %v1239 = vsel %vm1231, %v1225, %v1235
    %1240 = vmatprep.subr.mxu0 0.0
    %1241 = vmatpush1.msra.mxu0 %v174
    %1242 = vmatprep.subr.mxu0 0.0
    %1243 = vmatpush1.msra.mxu0 %v175
    %1244 = vmatprep.subr.mxu0 0.0
    %1245 = vmatpush1.msra.mxu0 %v176
    %1246 = vmatprep.subr.mxu0 0.0
    %1247 = vmatpush1.msra.mxu0 %v177
    %1248 = vmatprep.subr.mxu0 0.0
    %1249 = vmatpush1.msra.mxu0 %v178
    %1250 = vmatprep.subr.mxu0 0.0
    %1251 = vmatpush1.msra.mxu0 %v179
    %1252 = vmatprep.subr.mxu0 0.0
    %1253 = vmatpush1.msra.mxu0 %v180
    %1254 = vmatprep.subr.mxu0 0.0
    %1255 = vmatpush1.msra.mxu0 %v181
    %1256 = vmatprep.subr.mxu0 0.0
    %1257 = vmatpush1.msra.mxu0 %v182
    %1258 = vmatprep.subr.mxu0 0.0
    %1259 = vmatpush1.msra.mxu0 %v183
    %1260 = vmatprep.subr.mxu0 0.0
    %1261 = vmatpush1.msra.mxu0 %v184
    %1262 = vmatprep.subr.mxu0 0.0
    %1263 = vmatpush1.msra.mxu0 %v185
    %1264 = vmatprep.subr.mxu0 0.0
    %1265 = vmatpush1.msra.mxu0 %v186
    %1266 = vmatprep.subr.mxu0 0.0
    %1267 = vmatpush1.msra.mxu0 %v187
    %1268 = vmatprep.subr.mxu0 0.0
    %1269 = vmatpush1.msra.mxu0 %v188
    %1270 = vmatprep.subr.mxu0 0.0
    %1271 = vmatpush1.msra.mxu0 %v189
    %1272 = vmatprep.subr.mxu0 0.0
    %1273 = vmatpush1.msra.mxu0 0.0
    %1274 = vmatprep.subr.mxu0 0.0
    %1275 = vmatpush1.msra.mxu0 0.0
    %1276 = vmatprep.subr.mxu0 0.0
    %1277 = vmatpush1.msra.mxu0 0.0
    %1278 = vmatprep.subr.mxu0 0.0
    %1279 = vmatpush1.msra.mxu0 0.0
    %1280 = vmatprep.subr.mxu0 0.0
    %1281 = vmatpush1.msra.mxu0 0.0
    %1282 = vmatprep.subr.mxu0 0.0
    %1283 = vmatpush1.msra.mxu0 0.0
    %1284 = vmatprep.subr.mxu0 0.0
    %1285 = vmatpush1.msra.mxu0 0.0
    %1286 = vmatprep.subr.mxu0 0.0
    %1287 = vmatpush1.msra.mxu0 0.0
    %1288 = vmatprep.subr.mxu0 0.0
    %1289 = vmatpush1.msra.mxu0 0.0
    %1290 = vmatprep.subr.mxu0 0.0
    %1291 = vmatpush1.msra.mxu0 0.0
    %1292 = vmatprep.subr.mxu0 0.0
    %1293 = vmatpush1.msra.mxu0 0.0
    %1294 = vmatprep.subr.mxu0 0.0
    %1295 = vmatpush1.msra.mxu0 0.0
    %1296 = vmatprep.subr.mxu0 0.0
    %1297 = vmatpush1.msra.mxu0 0.0
    %1298 = vmatprep.subr.mxu0 0.0
    %1299 = vmatpush1.msra.mxu0 0.0
    %1300 = vmatprep.subr.mxu0 0.0
    %1301 = vmatpush1.msra.mxu0 0.0
    %1302 = vmatprep.subr.mxu0 0.0
    %1303 = vmatpush1.msra.mxu0 0.0
    %1304 = vmatprep.mubr.f32.mxu0 0.0
    %1305 = vmatmul.mubr.f32.gmra.mrb[0].mxu0 %v1236
    %v1306 = vpop.f32.mrb[0].mxu0
    %v1307 = vadd.f32 %v196, %v1306
    %v1308 = vpop.f32.mrb[0].mxu0
    %1309 = vmatprep.mubr.f32.mxu0 0.0
    %1310 = vmatmul.mubr.f32.gmra.mrb[0].mxu0 %v1237
    %v1311 = vpop.f32.mrb[0].mxu0
    %v1312 = vadd.f32 %v196, %v1311
    %v1313 = vpop.f32.mrb[0].mxu0
    %1314 = vmatprep.mubr.f32.mxu0 0.0
    %1315 = vmatmul.mubr.f32.gmra.mrb[0].mxu0 %v1238
    %v1316 = vpop.f32.mrb[0].mxu0
    %v1317 = vadd.f32 %v196, %v1316
    %v1318 = vpop.f32.mrb[0].mxu0
    %1319 = vmatprep.mubr.f32.mxu0 0.0
    %1320 = vmatmul.mubr.f32.gmra.mrb[0].mxu0 %v1239
    %v1321 = vpop.f32.mrb[0].mxu0
    %v1322 = vadd.f32 %v196, %v1321
    %v1323 = vpop.f32.mrb[0].mxu0
    %1324 = vdwg.mxu0
    %vm1325 = vcmp.gt.f32.partialorder %v1307, 0.0
    %vm1326 = vcmp.gt.f32.partialorder %v1312, 0.0
    %vm1327 = vcmp.gt.f32.partialorder %v1317, 0.0
    %vm1328 = vcmp.gt.f32.partialorder %v1322, 0.0
    %v1329 = vmul.f32 %v1307, 0.01
    %v1330 = vmul.f32 %v1312, 0.01
    %v1331 = vmul.f32 %v1317, 0.01
    %v1332 = vmul.f32 %v1322, 0.01
    %v1333 = vsel %vm1325, %v1307, %v1329
    %v1334 = vsel %vm1326, %v1312, %v1330
    %v1335 = vsel %vm1327, %v1317, %v1331
    %v1336 = vsel %vm1328, %v1322, %v1332
    %1337 = vmatprep.subr.mxu0 0.0
    %1338 = vmatpush1.msra.mxu0 %v296
    %1339 = vmatprep.subr.mxu0 0.0
    %1340 = vmatpush1.msra.mxu0 %v297
    %1341 = vmatprep.subr.mxu0 0.0
    %1342 = vmatpush1.msra.mxu0 %v298
    %1343 = vmatprep.subr.mxu0 0.0
    %1344 = vmatpush1.msra.mxu0 %v299
    %1345 = vmatprep.subr.mxu0 0.0
    %1346 = vmatpush1.msra.mxu0 %v300
    %1347 = vmatprep.subr.mxu0 0.0
    %1348 = vmatpush1.msra.mxu0 %v301
    %1349 = vmatprep.subr.mxu0 0.0
    %1350 = vmatpush1.msra.mxu0 %v302
    %1351 = vmatprep.subr.mxu0 0.0
    %1352 = vmatpush1.msra.mxu0 %v303
    %1353 = vmatprep.subr.mxu0 0.0
    %1354 = vmatpush1.msra.mxu0 %v304
    %1355 = vmatprep.subr.mxu0 0.0
    %1356 = vmatpush1.msra.mxu0 %v305
    %1357 = vmatprep.subr.mxu0 0.0
    %1358 = vmatpush1.msra.mxu0 %v306
    %1359 = vmatprep.subr.mxu0 0.0
    %1360 = vmatpush1.msra.mxu0 %v307
    %1361 = vmatprep.subr.mxu0 0.0
    %1362 = vmatpush1.msra.mxu0 %v308
    %1363 = vmatprep.subr.mxu0 0.0
    %1364 = vmatpush1.msra.mxu0 %v309
    %1365 = vmatprep.subr.mxu0 0.0
    %1366 = vmatpush1.msra.mxu0 %v310
    %1367 = vmatprep.subr.mxu0 0.0
    %1368 = vmatpush1.msra.mxu0 %v311
    %1369 = vmatprep.subr.mxu0 0.0
    %1370 = vmatpush1.msra.mxu0 0.0
    %1371 = vmatprep.subr.mxu0 0.0
    %1372 = vmatpush1.msra.mxu0 0.0
    %1373 = vmatprep.subr.mxu0 0.0
    %1374 = vmatpush1.msra.mxu0 0.0
    %1375 = vmatprep.subr.mxu0 0.0
    %1376 = vmatpush1.msra.mxu0 0.0
    %1377 = vmatprep.subr.mxu0 0.0
    %1378 = vmatpush1.msra.mxu0 0.0
    %1379 = vmatprep.subr.mxu0 0.0
    %1380 = vmatpush1.msra.mxu0 0.0
    %1381 = vmatprep.subr.mxu0 0.0
    %1382 = vmatpush1.msra.mxu0 0.0
    %1383 = vmatprep.subr.mxu0 0.0
    %1384 = vmatpush1.msra.mxu0 0.0
    %1385 = vmatprep.subr.mxu0 0.0
    %1386 = vmatpush1.msra.mxu0 0.0
    %1387 = vmatprep.subr.mxu0 0.0
    %1388 = vmatpush1.msra.mxu0 0.0
    %1389 = vmatprep.subr.mxu0 0.0
    %1390 = vmatpush1.msra.mxu0 0.0
    %1391 = vmatprep.subr.mxu0 0.0
    %1392 = vmatpush1.msra.mxu0 0.0
    %1393 = vmatprep.subr.mxu0 0.0
    %1394 = vmatpush1.msra.mxu0 0.0
    %1395 = vmatprep.subr.mxu0 0.0
    %1396 = vmatpush1.msra.mxu0 0.0
    %1397 = vmatprep.subr.mxu0 0.0
    %1398 = vmatpush1.msra.mxu0 0.0
    %1399 = vmatprep.subr.mxu0 0.0
    %1400 = vmatpush1.msra.mxu0 0.0
    %1401 = vmatprep.mubr.f32.mxu0 0.0
    %1402 = vmatmul.mubr.f32.gmra.mrb[0].mxu0 %v1333
    %v1403 = vpop.f32.mrb[0].mxu0
    %v1404 = vadd.f32 %v318, %v1403
    %v1405 = vpop.f32.mrb[0].mxu0
    %1406 = vmatprep.mubr.f32.mxu0 0.0
    %1407 = vmatmul.mubr.f32.gmra.mrb[0].mxu0 %v1334
    %v1408 = vpop.f32.mrb[0].mxu0
    %v1409 = vadd.f32 %v318, %v1408
    %v1410 = vpop.f32.mrb[0].mxu0
    %1411 = vmatprep.mubr.f32.mxu0 0.0
    %1412 = vmatmul.mubr.f32.gmra.mrb[0].mxu0 %v1335
    %v1413 = vpop.f32.mrb[0].mxu0
    %v1414 = vadd.f32 %v318, %v1413
    %v1415 = vpop.f32.mrb[0].mxu0
    %1416 = vmatprep.mubr.f32.mxu0 0.0
    %1417 = vmatmul.mubr.f32.gmra.mrb[0].mxu0 %v1336
    %v1418 = vpop.f32.mrb[0].mxu0
    %v1419 = vadd.f32 %v318, %v1418
    %v1420 = vpop.f32.mrb[0].mxu0
    %1421 = vdwg.mxu0
    %vm1422 = vcmp.gt.f32.partialorder %v1404, 0.0
    %vm1423 = vcmp.gt.f32.partialorder %v1409, 0.0
    %vm1424 = vcmp.gt.f32.partialorder %v1414, 0.0
    %vm1425 = vcmp.gt.f32.partialorder %v1419, 0.0
    %v1426 = vmul.f32 %v1404, 0.01
    %v1427 = vmul.f32 %v1409, 0.01
    %v1428 = vmul.f32 %v1414, 0.01
    %v1429 = vmul.f32 %v1419, 0.01
    %v1430 = vsel %vm1422, %v1404, %v1426
    %v1431 = vsel %vm1423, %v1409, %v1427
    %v1432 = vsel %vm1424, %v1414, %v1428
    %v1433 = vsel %vm1425, %v1419, %v1429
    %1434 = vmatprep.subr.mxu0 0.0
    %1435 = vmatpush1.msra.mxu0 %v418
    %1436 = vmatprep.subr.mxu0 0.0
    %1437 = vmatpush1.msra.mxu0 %v419
    %1438 = vmatprep.subr.mxu0 0.0
    %1439 = vmatpush1.msra.mxu0 %v420
    %1440 = vmatprep.subr.mxu0 0.0
    %1441 = vmatpush1.msra.mxu0 %v421
    %1442 = vmatprep.subr.mxu0 0.0
    %1443 = vmatpush1.msra.mxu0 %v422
    %1444 = vmatprep.subr.mxu0 0.0
    %1445 = vmatpush1.msra.mxu0 %v423
    %1446 = vmatprep.subr.mxu0 0.0
    %1447 = vmatpush1.msra.mxu0 %v424
    %1448 = vmatprep.subr.mxu0 0.0
    %1449 = vmatpush1.msra.mxu0 %v425
    %1450 = vmatprep.subr.mxu0 0.0
    %1451 = vmatpush1.msra.mxu0 %v426
    %1452 = vmatprep.subr.mxu0 0.0
    %1453 = vmatpush1.msra.mxu0 %v427
    %1454 = vmatprep.subr.mxu0 0.0
    %1455 = vmatpush1.msra.mxu0 %v428
    %1456 = vmatprep.subr.mxu0 0.0
    %1457 = vmatpush1.msra.mxu0 %v429
    %1458 = vmatprep.subr.mxu0 0.0
    %1459 = vmatpush1.msra.mxu0 %v430
    %1460 = vmatprep.subr.mxu0 0.0
    %1461 = vmatpush1.msra.mxu0 %v431
    %1462 = vmatprep.subr.mxu0 0.0
    %1463 = vmatpush1.msra.mxu0 %v432
    %1464 = vmatprep.subr.mxu0 0.0
    %1465 = vmatpush1.msra.mxu0 %v433
    %1466 = vmatprep.subr.mxu0 0.0
    %1467 = vmatpush1.msra.mxu0 0.0
    %1468 = vmatprep.subr.mxu0 0.0
    %1469 = vmatpush1.msra.mxu0 0.0
    %1470 = vmatprep.subr.mxu0 0.0
    %1471 = vmatpush1.msra.mxu0 0.0
    %1472 = vmatprep.subr.mxu0 0.0
    %1473 = vmatpush1.msra.mxu0 0.0
    %1474 = vmatprep.subr.mxu0 0.0
    %1475 = vmatpush1.msra.mxu0 0.0
    %1476 = vmatprep.subr.mxu0 0.0
    %1477 = vmatpush1.msra.mxu0 0.0
    %1478 = vmatprep.subr.mxu0 0.0
    %1479 = vmatpush1.msra.mxu0 0.0
    %1480 = vmatprep.subr.mxu0 0.0
    %1481 = vmatpush1.msra.mxu0 0.0
    %1482 = vmatprep.subr.mxu0 0.0
    %1483 = vmatpush1.msra.mxu0 0.0
    %1484 = vmatprep.subr.mxu0 0.0
    %1485 = vmatpush1.msra.mxu0 0.0
    %1486 = vmatprep.subr.mxu0 0.0
    %1487 = vmatpush1.msra.mxu0 0.0
    %1488 = vmatprep.subr.mxu0 0.0
    %1489 = vmatpush1.msra.mxu0 0.0
    %1490 = vmatprep.subr.mxu0 0.0
    %1491 = vmatpush1.msra.mxu0 0.0
    %1492 = vmatprep.subr.mxu0 0.0
    %1493 = vmatpush1.msra.mxu0 0.0
    %1494 = vmatprep.subr.mxu0 0.0
    %1495 = vmatpush1.msra.mxu0 0.0
    %1496 = vmatprep.subr.mxu0 0.0
    %1497 = vmatpush1.msra.mxu0 0.0
    %1498 = vmatprep.mubr.f32.mxu0 0.0
    %1499 = vmatmul.mubr.f32.gmra.mrb[0].mxu0 %v1430
    %v1500 = vpop.f32.mrb[0].mxu0
    %v1501 = vadd.f32 %v440, %v1500
    %v1502 = vpop.f32.mrb[0].mxu0
    %1503 = vmatprep.mubr.f32.mxu0 0.0
    %1504 = vmatmul.mubr.f32.gmra.mrb[0].mxu0 %v1431
    %v1505 = vpop.f32.mrb[0].mxu0
    %v1506 = vadd.f32 %v440, %v1505
    %v1507 = vpop.f32.mrb[0].mxu0
    %1508 = vmatprep.mubr.f32.mxu0 0.0
    %1509 = vmatmul.mubr.f32.gmra.mrb[0].mxu0 %v1432
    %v1510 = vpop.f32.mrb[0].mxu0
    %v1511 = vadd.f32 %v440, %v1510
    %v1512 = vpop.f32.mrb[0].mxu0
    %1513 = vmatprep.mubr.f32.mxu0 0.0
    %1514 = vmatmul.mubr.f32.gmra.mrb[0].mxu0 %v1433
    %v1515 = vpop.f32.mrb[0].mxu0
    %v1516 = vadd.f32 %v440, %v1515
    %v1517 = vpop.f32.mrb[0].mxu0
    %1518 = vdwg.mxu0
    %vm1519 = vcmp.gt.f32.partialorder %v1501, 0.0
    %vm1520 = vcmp.gt.f32.partialorder %v1506, 0.0
    %vm1521 = vcmp.gt.f32.partialorder %v1511, 0.0
    %vm1522 = vcmp.gt.f32.partialorder %v1516, 0.0
    %v1523 = vmul.f32 %v1501, 0.01
    %v1524 = vmul.f32 %v1506, 0.01
    %v1525 = vmul.f32 %v1511, 0.01
    %v1526 = vmul.f32 %v1516, 0.01
    %v1527 = vsel %vm1519, %v1501, %v1523
    %v1528 = vsel %vm1520, %v1506, %v1524
    %v1529 = vsel %vm1521, %v1511, %v1525
    %v1530 = vsel %vm1522, %v1516, %v1526
    %1531 = vmatprep.subr.mxu0 0.0
    %1532 = vmatpush1.msra.mxu0 %v1527
    %1533 = vmatprep.subr.mxu0 0.0
    %1534 = vmatpush1.msra.mxu0 %v1528
    %1535 = vmatprep.subr.mxu0 0.0
    %1536 = vmatpush1.msra.mxu0 %v1529
    %1537 = vmatprep.subr.mxu0 0.0
    %1538 = vmatpush1.msra.mxu0 %v1530
    %1539 = vmatprep.subr.mxu0 0.0
    %1540 = vmatpush1.msra.mxu0 0.0
    %1541 = vmatprep.subr.mxu0 0.0
    %1542 = vmatpush1.msra.mxu0 0.0
    %1543 = vmatprep.subr.mxu0 0.0
    %1544 = vmatpush1.msra.mxu0 0.0
    %1545 = vmatprep.subr.mxu0 0.0
    %1546 = vmatpush1.msra.mxu0 0.0
    %1547 = vmatprep.subr.mxu0 0.0
    %1548 = vmatpush1.msra.mxu0 0.0
    %1549 = vmatprep.subr.mxu0 0.0
    %1550 = vmatpush1.msra.mxu0 0.0
    %1551 = vmatprep.subr.mxu0 0.0
    %1552 = vmatpush1.msra.mxu0 0.0
    %1553 = vmatprep.subr.mxu0 0.0
    %1554 = vmatpush1.msra.mxu0 0.0
    %1555 = vmatprep.subr.mxu0 0.0
    %1556 = vmatpush1.msra.mxu0 0.0
    %1557 = vmatprep.subr.mxu0 0.0
    %1558 = vmatpush1.msra.mxu0 0.0
    %1559 = vmatprep.subr.mxu0 0.0
    %1560 = vmatpush1.msra.mxu0 0.0
    %1561 = vmatprep.subr.mxu0 0.0
    %1562 = vmatpush1.msra.mxu0 0.0
    %1563 = vmatprep.subr.mxu0 0.0
    %1564 = vmatpush1.msra.mxu0 0.0
    %1565 = vmatprep.subr.mxu0 0.0
    %1566 = vmatpush1.msra.mxu0 0.0
    %1567 = vmatprep.subr.mxu0 0.0
    %1568 = vmatpush1.msra.mxu0 0.0
    %1569 = vmatprep.subr.mxu0 0.0
    %1570 = vmatpush1.msra.mxu0 0.0
    %1571 = vmatprep.subr.mxu0 0.0
    %1572 = vmatpush1.msra.mxu0 0.0
    %1573 = vmatprep.subr.mxu0 0.0
    %1574 = vmatpush1.msra.mxu0 0.0
    %1575 = vmatprep.subr.mxu0 0.0
    %1576 = vmatpush1.msra.mxu0 0.0
    %1577 = vmatprep.subr.mxu0 0.0
    %1578 = vmatpush1.msra.mxu0 0.0
    %1579 = vmatprep.subr.mxu0 0.0
    %1580 = vmatpush1.msra.mxu0 0.0
    %1581 = vmatprep.subr.mxu0 0.0
    %1582 = vmatpush1.msra.mxu0 0.0
    %1583 = vmatprep.subr.mxu0 0.0
    %1584 = vmatpush1.msra.mxu0 0.0
    %1585 = vmatprep.subr.mxu0 0.0
    %1586 = vmatpush1.msra.mxu0 0.0
    %1587 = vmatprep.subr.mxu0 0.0
    %1588 = vmatpush1.msra.mxu0 0.0
    %1589 = vmatprep.subr.mxu0 0.0
    %1590 = vmatpush1.msra.mxu0 0.0
    %1591 = vmatprep.subr.mxu0 0.0
    %1592 = vmatpush1.msra.mxu0 0.0
    %1593 = vmatprep.subr.mxu0 0.0
    %1594 = vmatpush1.msra.mxu0 0.0
    %1595 = vmatprep.mubr.f32.mxu0 0.0
    %1596 = vmatmul.mubr.f32.gmra.mrb[0].mxu0 %v541
    %v1597 = vpop.f32.mrb[0].mxu0
    %v1598 = vadd.f32 0.0, %v1597
    %v1599 = vpop.f32.mrb[0].mxu0
    %1600 = vmatprep.mubr.f32.mxu0 0.0
    %1601 = vmatmul.mubr.f32.gmra.mrb[0].mxu0 %v544
    %v1602 = vpop.f32.mrb[0].mxu0
    %v1603 = vadd.f32 0.0, %v1602
    %v1604 = vpop.f32.mrb[0].mxu0
    %1605 = vdwg.mxu0
    %1606 = vmatprep.subr.mxu0 0.0
    %1607 = vmatpush1.msra.mxu0 %v622
    %1608 = vmatprep.subr.mxu0 0.0
    %1609 = vmatpush1.msra.mxu0 %v623
    %1610 = vmatprep.subr.mxu0 0.0
    %1611 = vmatpush1.msra.mxu0 %v624
    %1612 = vmatprep.subr.mxu0 0.0
    %1613 = vmatpush1.msra.mxu0 %v625
    %1614 = vmatprep.subr.mxu0 0.0
    %1615 = vmatpush1.msra.mxu0 %v626
    %1616 = vmatprep.subr.mxu0 0.0
    %1617 = vmatpush1.msra.mxu0 %v627
    %1618 = vmatprep.subr.mxu0 0.0
    %1619 = vmatpush1.msra.mxu0 %v628
    %1620 = vmatprep.subr.mxu0 0.0
    %1621 = vmatpush1.msra.mxu0 %v629
    %1622 = vmatprep.subr.mxu0 0.0
    %1623 = vmatpush1.msra.mxu0 %v630
    %1624 = vmatprep.subr.mxu0 0.0
    %1625 = vmatpush1.msra.mxu0 %v631
    %1626 = vmatprep.subr.mxu0 0.0
    %1627 = vmatpush1.msra.mxu0 %v632
    %1628 = vmatprep.subr.mxu0 0.0
    %1629 = vmatpush1.msra.mxu0 %v633
    %1630 = vmatprep.subr.mxu0 0.0
    %1631 = vmatpush1.msra.mxu0 %v634
    %1632 = vmatprep.subr.mxu0 0.0
    %1633 = vmatpush1.msra.mxu0 %v635
    %1634 = vmatprep.subr.mxu0 0.0
    %1635 = vmatpush1.msra.mxu0 %v636
    %1636 = vmatprep.subr.mxu0 0.0
    %1637 = vmatpush1.msra.mxu0 %v637
    %1638 = vmatprep.subr.mxu0 0.0
    %1639 = vmatpush1.msra.mxu0 0.0
    %1640 = vmatprep.subr.mxu0 0.0
    %1641 = vmatpush1.msra.mxu0 0.0
    %1642 = vmatprep.subr.mxu0 0.0
    %1643 = vmatpush1.msra.mxu0 0.0
    %1644 = vmatprep.subr.mxu0 0.0
    %1645 = vmatpush1.msra.mxu0 0.0
    %1646 = vmatprep.subr.mxu0 0.0
    %1647 = vmatpush1.msra.mxu0 0.0
    %1648 = vmatprep.subr.mxu0 0.0
    %1649 = vmatpush1.msra.mxu0 0.0
    %1650 = vmatprep.subr.mxu0 0.0
    %1651 = vmatpush1.msra.mxu0 0.0
    %1652 = vmatprep.subr.mxu0 0.0
    %1653 = vmatpush1.msra.mxu0 0.0
    %1654 = vmatprep.subr.mxu0 0.0
    %1655 = vmatpush1.msra.mxu0 0.0
    %1656 = vmatprep.subr.mxu0 0.0
    %1657 = vmatpush1.msra.mxu0 0.0
    %1658 = vmatprep.subr.mxu0 0.0
    %1659 = vmatpush1.msra.mxu0 0.0
    %1660 = vmatprep.subr.mxu0 0.0
    %1661 = vmatpush1.msra.mxu0 0.0
    %1662 = vmatprep.subr.mxu0 0.0
    %1663 = vmatpush1.msra.mxu0 0.0
    %1664 = vmatprep.subr.mxu0 0.0
    %1665 = vmatpush1.msra.mxu0 0.0
    %1666 = vmatprep.subr.mxu0 0.0
    %1667 = vmatpush1.msra.mxu0 0.0
    %1668 = vmatprep.subr.mxu0 0.0
    %1669 = vmatpush1.msra.mxu0 0.0
    %1670 = vmatprep.mubr.f32.mxu0 0.0
    %1671 = vmatmul.mubr.f32.gmra.mrb[0].mxu0 %v1598
    %v1672 = vpop.f32.mrb[0].mxu0
    %v1673 = vadd.f32 %v644, %v1672
    %v1674 = vpop.f32.mrb[0].mxu0
    %1675 = vmatprep.mubr.f32.mxu0 0.0
    %1676 = vmatmul.mubr.f32.gmra.mrb[0].mxu0 %v1603
    %v1677 = vpop.f32.mrb[0].mxu0
    %v1678 = vadd.f32 %v644, %v1677
    %v1679 = vpop.f32.mrb[0].mxu0
    %1680 = vdwg.mxu0
    %vm1681 = vcmp.gt.f32.partialorder %v1673, 0.0
    %vm1682 = vcmp.gt.f32.partialorder %v1678, 0.0
    %v1683 = vmul.f32 %v1673, 0.01
    %v1684 = vmul.f32 %v1678, 0.01
    %v1685 = vsel %vm1681, %v1673, %v1683
    %v1686 = vsel %vm1682, %v1678, %v1684
    %1687 = vmatprep.subr.mxu0 0.0
    %1688 = vmatpush1.msra.mxu0 %v728
    %1689 = vmatprep.subr.mxu0 0.0
    %1690 = vmatpush1.msra.mxu0 %v729
    %1691 = vmatprep.subr.mxu0 0.0
    %1692 = vmatpush1.msra.mxu0 %v730
    %1693 = vmatprep.subr.mxu0 0.0
    %1694 = vmatpush1.msra.mxu0 %v731
    %1695 = vmatprep.subr.mxu0 0.0
    %1696 = vmatpush1.msra.mxu0 %v732
    %1697 = vmatprep.subr.mxu0 0.0
    %1698 = vmatpush1.msra.mxu0 %v733
    %1699 = vmatprep.subr.mxu0 0.0
    %1700 = vmatpush1.msra.mxu0 %v734
    %1701 = vmatprep.subr.mxu0 0.0
    %1702 = vmatpush1.msra.mxu0 %v735
    %1703 = vmatprep.subr.mxu0 0.0
    %1704 = vmatpush1.msra.mxu0 %v736
    %1705 = vmatprep.subr.mxu0 0.0
    %1706 = vmatpush1.msra.mxu0 %v737
    %1707 = vmatprep.subr.mxu0 0.0
    %1708 = vmatpush1.msra.mxu0 %v738
    %1709 = vmatprep.subr.mxu0 0.0
    %1710 = vmatpush1.msra.mxu0 %v739
    %1711 = vmatprep.subr.mxu0 0.0
    %1712 = vmatpush1.msra.mxu0 %v740
    %1713 = vmatprep.subr.mxu0 0.0
    %1714 = vmatpush1.msra.mxu0 %v741
    %1715 = vmatprep.subr.mxu0 0.0
    %1716 = vmatpush1.msra.mxu0 %v742
    %1717 = vmatprep.subr.mxu0 0.0
    %1718 = vmatpush1.msra.mxu0 %v743
    %1719 = vmatprep.subr.mxu0 0.0
    %1720 = vmatpush1.msra.mxu0 0.0
    %1721 = vmatprep.subr.mxu0 0.0
    %1722 = vmatpush1.msra.mxu0 0.0
    %1723 = vmatprep.subr.mxu0 0.0
    %1724 = vmatpush1.msra.mxu0 0.0
    %1725 = vmatprep.subr.mxu0 0.0
    %1726 = vmatpush1.msra.mxu0 0.0
    %1727 = vmatprep.subr.mxu0 0.0
    %1728 = vmatpush1.msra.mxu0 0.0
    %1729 = vmatprep.subr.mxu0 0.0
    %1730 = vmatpush1.msra.mxu0 0.0
    %1731 = vmatprep.subr.mxu0 0.0
    %1732 = vmatpush1.msra.mxu0 0.0
    %1733 = vmatprep.subr.mxu0 0.0
    %1734 = vmatpush1.msra.mxu0 0.0
    %1735 = vmatprep.subr.mxu0 0.0
    %1736 = vmatpush1.msra.mxu0 0.0
    %1737 = vmatprep.subr.mxu0 0.0
    %1738 = vmatpush1.msra.mxu0 0.0
    %1739 = vmatprep.subr.mxu0 0.0
    %1740 = vmatpush1.msra.mxu0 0.0
    %1741 = vmatprep.subr.mxu0 0.0
    %1742 = vmatpush1.msra.mxu0 0.0
    %1743 = vmatprep.subr.mxu0 0.0
    %1744 = vmatpush1.msra.mxu0 0.0
    %1745 = vmatprep.subr.mxu0 0.0
    %1746 = vmatpush1.msra.mxu0 0.0
    %1747 = vmatprep.subr.mxu0 0.0
    %1748 = vmatpush1.msra.mxu0 0.0
    %1749 = vmatprep.subr.mxu0 0.0
    %1750 = vmatpush1.msra.mxu0 0.0
    %1751 = vmatprep.mubr.f32.mxu0 0.0
    %1752 = vmatmul.mubr.f32.gmra.mrb[0].mxu0 %v1685
    %v1753 = vpop.f32.mrb[0].mxu0
    %v1754 = vadd.f32 %v750, %v1753
    %v1755 = vpop.f32.mrb[0].mxu0
    %1756 = vmatprep.mubr.f32.mxu0 0.0
    %1757 = vmatmul.mubr.f32.gmra.mrb[0].mxu0 %v1686
    %v1758 = vpop.f32.mrb[0].mxu0
    %v1759 = vadd.f32 %v750, %v1758
    %v1760 = vpop.f32.mrb[0].mxu0
    %1761 = vdwg.mxu0
    %vm1762 = vcmp.gt.f32.partialorder %v1754, 0.0
    %vm1763 = vcmp.gt.f32.partialorder %v1759, 0.0
    %v1764 = vmul.f32 %v1754, 0.01
    %v1765 = vmul.f32 %v1759, 0.01
    %v1766 = vsel %vm1762, %v1754, %v1764
    %v1767 = vsel %vm1763, %v1759, %v1765
    %s1768 = scalar_lea.vmem [#allocation2], 1024
    %v1769 = vld [vmem:[%s1768] sm:$0xff]
    %v1770 = vld [vmem:[%s1768 + $0x8] sm:$0xff]
    %v1771 = vld [vmem:[%s1768 + $0x10] sm:$0xff]
    %v1772 = vld [vmem:[%s1768 + $0x18] sm:$0xff]
    %v1773 = vld [vmem:[%s1768 + $0x20] sm:$0xff]
    %v1774 = vld [vmem:[%s1768 + $0x28] sm:$0xff]
    %v1775 = vld [vmem:[%s1768 + $0x30] sm:$0xff]
    %v1776 = vld [vmem:[%s1768 + $0x38] sm:$0xff]
    %v1777 = vld [vmem:[%s1768 + $0x40] sm:$0xff]
    %v1778 = vld [vmem:[%s1768 + $0x48] sm:$0xff]
    %v1779 = vld [vmem:[%s1768 + $0x50] sm:$0xff]
    %v1780 = vld [vmem:[%s1768 + $0x58] sm:$0xff]
    %v1781 = vld [vmem:[%s1768 + $0x60] sm:$0xff]
    %v1782 = vld [vmem:[%s1768 + $0x68] sm:$0xff]
    %v1783 = vld [vmem:[%s1768 + $0x70] sm:$0xff]
    %v1784 = vld [vmem:[%s1768 + $0x78] sm:$0xff]
    %s1785 = scalar_lea.vmem %s5, 8
    %v1786 = vld [vmem:[%s1785] sm:$0x1]
    %v1788 = vlaneseq
    %v1789 = vshrl.u32 %v1788, 7
    %v1790 = vsub.s32 0, %v1789
    %v1791 = vrot.slane %v1786, %v1790
    %1793 = vmatprep.subr.mxu0 0.0
    %1794 = vmatpush1.msra.mxu0 %v1769
    %1795 = vmatprep.subr.mxu0 0.0
    %1796 = vmatpush1.msra.mxu0 %v1770
    %1797 = vmatprep.subr.mxu0 0.0
    %1798 = vmatpush1.msra.mxu0 %v1771
    %1799 = vmatprep.subr.mxu0 0.0
    %1800 = vmatpush1.msra.mxu0 %v1772
    %1801 = vmatprep.subr.mxu0 0.0
    %1802 = vmatpush1.msra.mxu0 %v1773
    %1803 = vmatprep.subr.mxu0 0.0
    %1804 = vmatpush1.msra.mxu0 %v1774
    %1805 = vmatprep.subr.mxu0 0.0
    %1806 = vmatpush1.msra.mxu0 %v1775
    %1807 = vmatprep.subr.mxu0 0.0
    %1808 = vmatpush1.msra.mxu0 %v1776
    %1809 = vmatprep.subr.mxu0 0.0
    %1810 = vmatpush1.msra.mxu0 %v1777
    %1811 = vmatprep.subr.mxu0 0.0
    %1812 = vmatpush1.msra.mxu0 %v1778
    %1813 = vmatprep.subr.mxu0 0.0
    %1814 = vmatpush1.msra.mxu0 %v1779
    %1815 = vmatprep.subr.mxu0 0.0
    %1816 = vmatpush1.msra.mxu0 %v1780
    %1817 = vmatprep.subr.mxu0 0.0
    %1818 = vmatpush1.msra.mxu0 %v1781
    %1819 = vmatprep.subr.mxu0 0.0
    %1820 = vmatpush1.msra.mxu0 %v1782
    %1821 = vmatprep.subr.mxu0 0.0
    %1822 = vmatpush1.msra.mxu0 %v1783
    %1823 = vmatprep.subr.mxu0 0.0
    %1824 = vmatpush1.msra.mxu0 %v1784
    %1825 = vmatprep.subr.mxu0 0.0
    %1826 = vmatpush1.msra.mxu0 0.0
    %1827 = vmatprep.subr.mxu0 0.0
    %1828 = vmatpush1.msra.mxu0 0.0
    %1829 = vmatprep.subr.mxu0 0.0
    %1830 = vmatpush1.msra.mxu0 0.0
    %1831 = vmatprep.subr.mxu0 0.0
    %1832 = vmatpush1.msra.mxu0 0.0
    %1833 = vmatprep.subr.mxu0 0.0
    %1834 = vmatpush1.msra.mxu0 0.0
    %1835 = vmatprep.subr.mxu0 0.0
    %1836 = vmatpush1.msra.mxu0 0.0
    %1837 = vmatprep.subr.mxu0 0.0
    %1838 = vmatpush1.msra.mxu0 0.0
    %1839 = vmatprep.subr.mxu0 0.0
    %1840 = vmatpush1.msra.mxu0 0.0
    %1841 = vmatprep.subr.mxu0 0.0
    %1842 = vmatpush1.msra.mxu0 0.0
    %1843 = vmatprep.subr.mxu0 0.0
    %1844 = vmatpush1.msra.mxu0 0.0
    %1845 = vmatprep.subr.mxu0 0.0
    %1846 = vmatpush1.msra.mxu0 0.0
    %1847 = vmatprep.subr.mxu0 0.0
    %1848 = vmatpush1.msra.mxu0 0.0
    %1849 = vmatprep.subr.mxu0 0.0
    %1850 = vmatpush1.msra.mxu0 0.0
    %1851 = vmatprep.subr.mxu0 0.0
    %1852 = vmatpush1.msra.mxu0 0.0
    %1853 = vmatprep.subr.mxu0 0.0
    %1854 = vmatpush1.msra.mxu0 0.0
    %1855 = vmatprep.subr.mxu0 0.0
    %1856 = vmatpush1.msra.mxu0 0.0
    %1857 = vmatprep.mubr.f32.mxu0 0.0
    %1858 = vmatmul.mubr.f32.gmra.mrb[0].mxu0 %v1766
    %v1859 = vpop.f32.mrb[0].mxu0
    %v1860 = vadd.f32 %v1791, %v1859
    %v1861 = vpop.f32.mrb[0].mxu0
    %1862 = vmatprep.mubr.f32.mxu0 0.0
    %1863 = vmatmul.mubr.f32.gmra.mrb[0].mxu0 %v1767
    %v1864 = vpop.f32.mrb[0].mxu0
    %v1865 = vadd.f32 %v1791, %v1864
    %v1866 = vpop.f32.mrb[0].mxu0
    %1867 = vdwg.mxu0
    %vm1868 = vcmp.gt.f32.partialorder %v1860, 0.0
    %vm1869 = vcmp.gt.f32.partialorder %v1865, 0.0
    %v1870 = vmul.f32 %v1860, 0.01
    %v1871 = vmul.f32 %v1865, 0.01
    %v1872 = vsel %vm1868, %v1860, %v1870
    %v1873 = vsel %vm1869, %v1865, %v1871
    %s1874 = scalar_lea.vmem [#allocation2], 1152
    %v1875 = vld [vmem:[%s1874] sm:$0xff]
    %v1876 = vld [vmem:[%s1874 + $0x8] sm:$0xff]
    %v1877 = vld [vmem:[%s1874 + $0x10] sm:$0xff]
    %v1878 = vld [vmem:[%s1874 + $0x18] sm:$0xff]
    %v1879 = vld [vmem:[%s1874 + $0x20] sm:$0xff]
    %v1880 = vld [vmem:[%s1874 + $0x28] sm:$0xff]
    %v1881 = vld [vmem:[%s1874 + $0x30] sm:$0xff]
    %v1882 = vld [vmem:[%s1874 + $0x38] sm:$0xff]
    %v1883 = vld [vmem:[%s1874 + $0x40] sm:$0xff]
    %v1884 = vld [vmem:[%s1874 + $0x48] sm:$0xff]
    %v1885 = vld [vmem:[%s1874 + $0x50] sm:$0xff]
    %v1886 = vld [vmem:[%s1874 + $0x58] sm:$0xff]
    %v1887 = vld [vmem:[%s1874 + $0x60] sm:$0xff]
    %v1888 = vld [vmem:[%s1874 + $0x68] sm:$0xff]
    %v1889 = vld [vmem:[%s1874 + $0x70] sm:$0xff]
    %v1890 = vld [vmem:[%s1874 + $0x78] sm:$0xff]
    %s1891 = scalar_lea.vmem %s5, 9
    %v1892 = vld [vmem:[%s1891] sm:$0x1]
    %v1894 = vlaneseq
    %v1895 = vshrl.u32 %v1894, 7
    %v1896 = vsub.s32 0, %v1895
    %v1897 = vrot.slane %v1892, %v1896
    %1899 = vmatprep.subr.mxu0 0.0
    %1900 = vmatpush1.msra.mxu0 %v1875
    %1901 = vmatprep.subr.mxu0 0.0
    %1902 = vmatpush1.msra.mxu0 %v1876
    %1903 = vmatprep.subr.mxu0 0.0
    %1904 = vmatpush1.msra.mxu0 %v1877
    %1905 = vmatprep.subr.mxu0 0.0
    %1906 = vmatpush1.msra.mxu0 %v1878
    %1907 = vmatprep.subr.mxu0 0.0
    %1908 = vmatpush1.msra.mxu0 %v1879
    %1909 = vmatprep.subr.mxu0 0.0
    %1910 = vmatpush1.msra.mxu0 %v1880
    %1911 = vmatprep.subr.mxu0 0.0
    %1912 = vmatpush1.msra.mxu0 %v1881
    %1913 = vmatprep.subr.mxu0 0.0
    %1914 = vmatpush1.msra.mxu0 %v1882
    %1915 = vmatprep.subr.mxu0 0.0
    %1916 = vmatpush1.msra.mxu0 %v1883
    %1917 = vmatprep.subr.mxu0 0.0
    %1918 = vmatpush1.msra.mxu0 %v1884
    %1919 = vmatprep.subr.mxu0 0.0
    %1920 = vmatpush1.msra.mxu0 %v1885
    %1921 = vmatprep.subr.mxu0 0.0
    %1922 = vmatpush1.msra.mxu0 %v1886
    %1923 = vmatprep.subr.mxu0 0.0
    %1924 = vmatpush1.msra.mxu0 %v1887
    %1925 = vmatprep.subr.mxu0 0.0
    %1926 = vmatpush1.msra.mxu0 %v1888
    %1927 = vmatprep.subr.mxu0 0.0
    %1928 = vmatpush1.msra.mxu0 %v1889
    %1929 = vmatprep.subr.mxu0 0.0
    %1930 = vmatpush1.msra.mxu0 %v1890
    %1931 = vmatprep.subr.mxu0 0.0
    %1932 = vmatpush1.msra.mxu0 0.0
    %1933 = vmatprep.subr.mxu0 0.0
    %1934 = vmatpush1.msra.mxu0 0.0
    %1935 = vmatprep.subr.mxu0 0.0
    %1936 = vmatpush1.msra.mxu0 0.0
    %1937 = vmatprep.subr.mxu0 0.0
    %1938 = vmatpush1.msra.mxu0 0.0
    %1939 = vmatprep.subr.mxu0 0.0
    %1940 = vmatpush1.msra.mxu0 0.0
    %1941 = vmatprep.subr.mxu0 0.0
    %1942 = vmatpush1.msra.mxu0 0.0
    %1943 = vmatprep.subr.mxu0 0.0
    %1944 = vmatpush1.msra.mxu0 0.0
    %1945 = vmatprep.subr.mxu0 0.0
    %1946 = vmatpush1.msra.mxu0 0.0
    %1947 = vmatprep.subr.mxu0 0.0
    %1948 = vmatpush1.msra.mxu0 0.0
    %1949 = vmatprep.subr.mxu0 0.0
    %1950 = vmatpush1.msra.mxu0 0.0
    %1951 = vmatprep.subr.mxu0 0.0
    %1952 = vmatpush1.msra.mxu0 0.0
    %1953 = vmatprep.subr.mxu0 0.0
    %1954 = vmatpush1.msra.mxu0 0.0
    %1955 = vmatprep.subr.mxu0 0.0
    %1956 = vmatpush1.msra.mxu0 0.0
    %1957 = vmatprep.subr.mxu0 0.0
    %1958 = vmatpush1.msra.mxu0 0.0
    %1959 = vmatprep.subr.mxu0 0.0
    %1960 = vmatpush1.msra.mxu0 0.0
    %1961 = vmatprep.subr.mxu0 0.0
    %1962 = vmatpush1.msra.mxu0 0.0
    %1963 = vmatprep.mubr.f32.mxu0 0.0
    %1964 = vmatmul.mubr.f32.gmra.mrb[0].mxu0 %v1872
    %v1965 = vpop.f32.mrb[0].mxu0
    %v1966 = vadd.f32 %v1897, %v1965
    %v1967 = vpop.f32.mrb[0].mxu0
    %1968 = vmatprep.mubr.f32.mxu0 0.0
    %1969 = vmatmul.mubr.f32.gmra.mrb[0].mxu0 %v1873
    %v1970 = vpop.f32.mrb[0].mxu0
    %v1971 = vadd.f32 %v1897, %v1970
    %v1972 = vpop.f32.mrb[0].mxu0
    %1973 = vdwg.mxu0
    %vm1974 = vcmp.gt.f32.partialorder %v1966, 0.0
    %vm1975 = vcmp.gt.f32.partialorder %v1971, 0.0
    %v1976 = vmul.f32 %v1966, 0.01
    %v1977 = vmul.f32 %v1971, 0.01
    %v1978 = vsel %vm1974, %v1966, %v1976
    %v1979 = vsel %vm1975, %v1971, %v1977
    %1980 = vst [vmem:[%s6] sm:$0xff] %v1978
    %1981 = vst [vmem:[%s6 + $0x8] sm:$0xff] %v1979
    // Predicated region
    $region30: #{run.1} parent=1 // pred_check
      _
    $region31: #{run.1} parent=1 // pred_check_branch
      %1983 = sbr.rel (0) target = $region33
    $region32: #{run.1} parent=1 // pred_region
      _
    $region33: #{run.1} parent=1 // pred_fallthru
      _
    // Predicated region
    $region34: #{run.1} parent=1 // pred_check
      _
    $region35: #{run.1} parent=1 // pred_check_branch
      %1985 = sbr.rel (0) target = $region37
    $region36: #{run.1} parent=1 // pred_region
      _
    $region37: #{run.1} parent=1 // pred_fallthru
      _
    %1986 = vsyncpa [#allocation3], 1

</llo_original>
